<compile_context>
chip_gen: v5e
topology: v5e:2x2
jax: 0.10.0
libtpu: 0.0.40
codegen_flags: <defaults>
</compile_context>

<pallas_src>
import functools

import jax
import jax.numpy as jnp
from jax.experimental import pallas as pl
from jax.experimental.pallas import tpu as pltpu

_LN2 = 0.6931471805599453
_NEG_PAD = -1e9  # finite "minus infinity" for class-axis padding


def _kd_loss_kernel(stu_ref, tea_ref, label_ref, scalars_ref, out_ref, *,
                    inv_temperature, n_rows, tile_n):
    """One batch tile: softmax statistics, guided mask, KL partial sum."""
    inv_t = jnp.float32(inv_temperature)

    # Student log-softmax only ever appears as s = x_sh - lse_x inside the
    # refactored product, so keep just x_sh and the per-row lse_x.
    x = stu_ref[...].astype(jnp.float32) * inv_t
    x_sh = x - jnp.max(x, axis=1, keepdims=True)
    lse_x = jnp.log(jnp.sum(jnp.exp(x_sh), axis=1, keepdims=True))      # (tn, 1)

    # Teacher: shifted logits, exp, per-row sum / log-sum (shared work).
    y = tea_ref[...].astype(jnp.float32) * inv_t
    y_sh = y - jnp.max(y, axis=1, keepdims=True)
    e = jnp.exp(y_sh)
    sum_e = jnp.sum(e, axis=1, keepdims=True)                           # (tn, 1)
    lse_y = jnp.log(sum_e)                                              # (tn, 1)

    # t_argmax from the shifted teacher logits (softmax is monotonic): maxima
    # are exactly where y_sh == 0; first index wins (torch.argmax semantics).
    tn, c = y_sh.shape
    cls_idx = jax.lax.broadcasted_iota(jnp.int32, (tn, c), 1)
    t_argmax = jnp.min(jnp.where(y_sh >= 0.0, cls_idx, jnp.int32(c)),
                       axis=1, keepdims=True)                           # (tn, 1)

    # mask = (eq(label, argmax) + 1) * 0.9**(epoch//30); log(mask) from the
    # precomputed log(scale) scalar + eq*ln2 -- no per-row EUP log.
    scale = scalars_ref[0]
    log_scale = scalars_ref[1]
    eq = (label_ref[...] == t_argmax).astype(jnp.float32)               # (tn, 1)
    mask = (eq + 1.0) * scale
    log_mask = eq * jnp.float32(_LN2) + log_scale

    # KL refactor with sum(t) == 1 (t, log_t, s never materialised):
    #   sum_c (t*m)*(log(t*m) - m*s)
    # = m * ( sum_c e*(y_sh - m*x_sh)/sum_e - (lse_y - m*lse_x) + log m )
    inner = jnp.sum(e * (y_sh - mask * x_sh), axis=1, keepdims=True)    # (tn, 1)
    row = mask * (inner / sum_e - (lse_y - mask * lse_x) + log_mask)    # (tn, 1)

    # Zero grid-padding rows (only materialised when N % tile_n != 0).
    if n_rows % tile_n != 0:
        rid = (pl.program_id(0) * tile_n
               + jax.lax.broadcasted_iota(jnp.int32, row.shape, 0))
        row = jnp.where(rid < n_rows, row, 0.0)

    # Lane-dense (1, 8, 128) partial block; the wrapper reads element [:, 0, 0].
    out_ref[...] = jnp.broadcast_to(jnp.sum(row), out_ref.shape)


def _vmem_bytes_per_row(c_pad, itemsize):
    """Per-batch-row VMEM estimate: 2 logit inputs x 2 pipeline buffers in the
    input dtype plus ~8 f32 [tile, C] kernel temporaries."""
    return 4 * c_pad * itemsize + 8 * c_pad * 4 + 64


def _choose_tile_n(n, c_pad, itemsize):
    """Batch tile: >= ~4 MiB of HBM per grid step (amortise the ~0.35us fixed
    per-step cost), kernel temporaries within ~24 MiB of VMEM (fits v7x's
    64 MiB with slack), sublane-aligned, and >= 2 grid steps when there is
    enough work so both v7x TensorCores get a 'parallel' slice."""
    if n <= 8:
        return n
    rows_by_block = max(8, (4 * 1024 * 1024) // (c_pad * itemsize))
    rows_by_vmem = max(8, (24 * 1024 * 1024) // _vmem_bytes_per_row(c_pad, itemsize))
    tile = min(n, rows_by_block, rows_by_vmem, 4096)
    if tile == n and n >= 64:
        # One tile would leave a v7x TensorCore idle; split in two halves
        # (half rounded up to a sublane multiple -- still <= n for n >= 64).
        half = -(-n // 2)
        tile = -(-half // 8) * 8
    elif tile < n:
        tile = max(8, (tile // 8) * 8)
    return tile


def kd_loss_v2(stu_pred, tea_pred, label, epoch, temperature, *,
               tile_n=None, downcast_to_bf16=True):
    """Pallas implementation of KDLossv2.forward. Returns a scalar f32 loss.

    downcast_to_bf16: cast f32 logits to bf16 before the kernel (halves HBM
    traffic -- the dominant lever on v5e/v6e for this streaming kernel). The
    kernel always upcasts to f32 internally; pass False for exact f32 math.
    """
    N, C = stu_pred.shape

    if downcast_to_bf16 and stu_pred.dtype == jnp.float32:
        stu_pred = stu_pred.astype(jnp.bfloat16)
        tea_pred = tea_pred.astype(jnp.bfloat16)

    # Pad the class axis to a lane multiple with a large *finite* negative so
    # blocks stay lane-dense; padded classes get exp(.) == 0 and contribute 0.
    c_pad = ((C + 127) // 128) * 128
    if c_pad != C:
        widths = ((0, 0), (0, c_pad - C))
        stu_pred = jnp.pad(stu_pred, widths, constant_values=_NEG_PAD)
        tea_pred = jnp.pad(tea_pred, widths, constant_values=_NEG_PAD)

    itemsize = stu_pred.dtype.itemsize
    if tile_n is None:
        tile_n = _choose_tile_n(N, c_pad, itemsize)
    num_tiles = -(-N // tile_n)

    # Epoch factor 0.9**(epoch//30) and its log (glue math, off the hot path).
    exp30 = (jnp.asarray(epoch, jnp.int32) // 30).astype(jnp.float32)
    scale = jnp.float32(0.9) ** exp30
    scalars = jnp.stack([scale, jnp.log(scale)]).astype(jnp.float32)    # (2,)

    label_2d = jnp.asarray(label, jnp.int32).reshape(N, 1)

    # VMEM limit derived from the actual tile footprint (not a flat 48 MiB).
    est = tile_n * _vmem_bytes_per_row(c_pad, itemsize) + (1 << 19)
    vmem_limit = int(min(48 * 1024 * 1024, max(16 * 1024 * 1024, (est * 3) // 2)))

    cost = pl.CostEstimate(
        flops=14 * N * c_pad,
        transcendentals=2 * N * c_pad + 4 * N,
        bytes_accessed=2 * N * c_pad * itemsize + N * 4 + num_tiles * 8 * 128 * 4,
    )

    # TODO(synk): for vocab-scale C (>= ~32k classes) add a class-axis grid
    # dimension with an online-softmax reduction; a single [tile_n, C] f32
    # working set no longer fits v7x's 64 MiB VMEM in that regime.
    partials = pl.pallas_call(
        functools.partial(_kd_loss_kernel,
                          inv_temperature=1.0 / float(temperature),
                          n_rows=N, tile_n=tile_n),
        out_shape=jax.ShapeDtypeStruct((num_tiles, 8, 128), jnp.float32),
        grid=(num_tiles,),
        in_specs=[
            pl.BlockSpec((tile_n, c_pad), lambda i: (i, 0)),     # student logits
            pl.BlockSpec((tile_n, c_pad), lambda i: (i, 0)),     # teacher logits
            pl.BlockSpec((tile_n, 1), lambda i: (i, 0)),         # labels (int32)
            pl.BlockSpec(memory_space=pltpu.MemorySpace.SMEM),   # [scale, log(scale)]
        ],
        out_specs=pl.BlockSpec((1, 8, 128), lambda i: (i, 0, 0)),
        compiler_params=pltpu.CompilerParams(
            dimension_semantics=("parallel",),
            vmem_limit_bytes=vmem_limit,
        ),
        cost_estimate=cost,
    )(stu_pred, tea_pred, label_2d, scalars)

    # Finalize: sum of per-tile partials, then * T^2 / N.
    return (jnp.sum(partials[:, 0, 0])
            * jnp.float32(temperature * temperature) / jnp.float32(N))


def _reference(stu_pred, tea_pred, label, epoch, T):
    """Pure-JAX reference (mirrors the PyTorch forward) for sanity checking."""
    s = jax.nn.log_softmax(stu_pred.astype(jnp.float32) / T, axis=1)
    t = jax.nn.softmax(tea_pred.astype(jnp.float32) / T, axis=1)
    t_argmax = jnp.argmax(t, axis=1)
    factor = 0.9
    mask = (jnp.equal(label, t_argmax).astype(jnp.float32) + 1.0) * factor ** (epoch // 30)
    count = stu_pred.shape[0]
    mask = mask[:, None]
    correct_s = s * mask
    correct_t = t * mask
    kl = correct_t * (jnp.log(correct_t) - correct_s)
    return jnp.sum(kl) * T ** 2 / count


if __name__ == "__main__":
    T = 4.0
    epoch = 65  # -> factor 0.9 ** 2

    # Case 1: exact f32 path (downcast disabled), multi-tile ragged grid, C=128.
    k1, k2, k3 = jax.random.split(jax.random.PRNGKey(0), 3)
    N, C = 200, 128
    stu = jax.random.normal(k1, (N, C), dtype=jnp.float32)
    tea = jax.random.normal(k2, (N, C), dtype=jnp.float32)
    lab = jax.random.randint(k3, (N,), 0, C, dtype=jnp.int32)

    loss_f32 = jax.block_until_ready(
        kd_loss_v2(stu, tea, lab, epoch, T, downcast_to_bf16=False))
    ref_f32 = _reference(stu, tea, lab, epoch, T)
    assert jnp.allclose(loss_f32, ref_f32, rtol=5e-5, atol=5e-5), (loss_f32, ref_f32)

    # Case 2: default bf16 streaming path; compare against the reference run on
    # the identically bf16-rounded logits.
    loss_bf16 = jax.block_until_ready(kd_loss_v2(stu, tea, lab, epoch, T))
    ref_bf16 = _reference(stu.astype(jnp.bfloat16), tea.astype(jnp.bfloat16),
                          lab, epoch, T)
    assert jnp.allclose(loss_bf16, ref_bf16, rtol=2e-4, atol=2e-4), (loss_bf16, ref_bf16)

    # Case 3: tiny non-aligned shape (single tile, class axis padded 40 -> 128).
    k4, k5, k6 = jax.random.split(jax.random.PRNGKey(1), 3)
    N2, C2 = 6, 40
    stu2 = jax.random.normal(k4, (N2, C2), dtype=jnp.float32)
    tea2 = jax.random.normal(k5, (N2, C2), dtype=jnp.float32)
    lab2 = jax.random.randint(k6, (N2,), 0, C2, dtype=jnp.int32)
    loss2 = jax.block_until_ready(
        kd_loss_v2(stu2, tea2, lab2, epoch, T, downcast_to_bf16=False))
    ref2 = _reference(stu2, tea2, lab2, epoch, T)
    assert jnp.allclose(loss2, ref2, rtol=5e-5, atol=5e-5), (loss2, ref2)

    print("KERNEL_OK")
</pallas_src>

<mosaic_0001>
module attributes {stable_mosaic.version = 11 : i64} {
  func.func @_kd_loss_kernel(%arg0: i32, %arg1: memref<104x128xf32, #tpu.memory_space<vmem>>, %arg2: memref<104x128xf32, #tpu.memory_space<vmem>>, %arg3: memref<104x1xi32, #tpu.memory_space<vmem>>, %arg4: memref<2xf32, #tpu.memory_space<smem>>, %arg5: memref<1x8x128xf32, #tpu.memory_space<vmem>>) attributes {dimension_semantics = [#tpu.dimension_semantics<parallel>], iteration_bounds = array<i64: 2>, scalar_prefetch = 0 : i64, scratch_operands = 0 : i64, tpu.core_type = #tpu.core_type<tc>, window_params = [{transform_indices = @transform_0, window_bounds = array<i64: 104, 128>}, {transform_indices = @transform_1, window_bounds = array<i64: 104, 128>}, {transform_indices = @transform_2, window_bounds = array<i64: 104, 1>}, {transform_indices = @transform_3, window_bounds = array<i64: 2>}, {transform_indices = @transform_4, window_bounds = array<i64: 1, 8, 128>}]} {
    %c0 = arith.constant 0 : index
    %c0_0 = arith.constant 0 : index
    %0 = vector.load %arg1[%c0, %c0_0] : memref<104x128xf32, #tpu.memory_space<vmem>>, vector<104x128xf32>
    %cst = arith.constant 2.500000e-01 : f32
    %1 = vector.broadcast %cst : f32 to vector<104x128xf32>
    %2 = arith.mulf %0, %1 : vector<104x128xf32>
    %cst_1 = arith.constant dense<0xFF800000> : vector<104xf32>
    %3 = vector.multi_reduction <maximumf>, %2, %cst_1 [1] : vector<104x128xf32> to vector<104xf32>
    %4 = vector.shape_cast %3 : vector<104xf32> to vector<104x1xf32>
    %5 = vector.broadcast %4 : vector<104x1xf32> to vector<104x128xf32>
    %6 = arith.subf %2, %5 : vector<104x128xf32>
    %7 = math.exp %6 : vector<104x128xf32>
    %cst_2 = arith.constant dense<0.000000e+00> : vector<104xf32>
    %8 = vector.multi_reduction <add>, %7, %cst_2 [1] : vector<104x128xf32> to vector<104xf32>
    %9 = vector.shape_cast %8 : vector<104xf32> to vector<104x1xf32>
    %10 = math.log %9 : vector<104x1xf32>
    %c0_3 = arith.constant 0 : index
    %c0_4 = arith.constant 0 : index
    %11 = vector.load %arg2[%c0_3, %c0_4] : memref<104x128xf32, #tpu.memory_space<vmem>>, vector<104x128xf32>
    %cst_5 = arith.constant 2.500000e-01 : f32
    %12 = vector.broadcast %cst_5 : f32 to vector<104x128xf32>
    %13 = arith.mulf %11, %12 : vector<104x128xf32>
    %cst_6 = arith.constant dense<0xFF800000> : vector<104xf32>
    %14 = vector.multi_reduction <maximumf>, %13, %cst_6 [1] : vector<104x128xf32> to vector<104xf32>
    %15 = vector.shape_cast %14 : vector<104xf32> to vector<104x1xf32>
    %16 = vector.broadcast %15 : vector<104x1xf32> to vector<104x128xf32>
    %17 = arith.subf %13, %16 : vector<104x128xf32>
    %18 = math.exp %17 : vector<104x128xf32>
    %cst_7 = arith.constant dense<0.000000e+00> : vector<104xf32>
    %19 = vector.multi_reduction <add>, %18, %cst_7 [1] : vector<104x128xf32> to vector<104xf32>
    %20 = vector.shape_cast %19 : vector<104xf32> to vector<104x1xf32>
    %21 = math.log %20 : vector<104x1xf32>
    %22 = tpu.iota {dimensions = array<i32: 1>} : vector<104x128xi32>
    %cst_8 = arith.constant 0.000000e+00 : f32
    %23 = vector.broadcast %cst_8 : f32 to vector<104x128xf32>
    %24 = arith.cmpf oge, %17, %23 : vector<104x128xf32>
    %c128_i32 = arith.constant 128 : i32
    %25 = vector.broadcast %c128_i32 : i32 to vector<104x128xi32>
    %26 = arith.select %24, %22, %25 : vector<104x128xi1>, vector<104x128xi32>
    %cst_9 = arith.constant dense<2147483647> : vector<104xi32>
    %27 = vector.multi_reduction <minsi>, %26, %cst_9 [1] : vector<104x128xi32> to vector<104xi32>
    %28 = vector.shape_cast %27 : vector<104xi32> to vector<104x1xi32>
    %c0_10 = arith.constant 0 : index
    %29 = memref.load %arg4[%c0_10] : memref<2xf32, #tpu.memory_space<smem>>
    %c1 = arith.constant 1 : index
    %30 = memref.load %arg4[%c1] : memref<2xf32, #tpu.memory_space<smem>>
    %c0_11 = arith.constant 0 : index
    %c0_12 = arith.constant 0 : index
    %31 = vector.load %arg3[%c0_11, %c0_12] : memref<104x1xi32, #tpu.memory_space<vmem>>, vector<104x1xi32>
    %32 = arith.cmpi eq, %31, %28 : vector<104x1xi32>
    %33 = arith.extui %32 : vector<104x1xi1> to vector<104x1xi32>
    %34 = arith.sitofp %33 : vector<104x1xi32> to vector<104x1xf32>
    %cst_13 = arith.constant 1.000000e+00 : f32
    %35 = vector.broadcast %cst_13 : f32 to vector<104x1xf32>
    %36 = arith.addf %34, %35 : vector<104x1xf32>
    %37 = vector.broadcast %29 : f32 to vector<104x1xf32>
    %38 = arith.mulf %36, %37 : vector<104x1xf32>
    %cst_14 = arith.constant 0.693147182 : f32
    %39 = vector.broadcast %cst_14 : f32 to vector<104x1xf32>
    %40 = arith.mulf %34, %39 : vector<104x1xf32>
    %41 = vector.broadcast %30 : f32 to vector<104x1xf32>
    %42 = arith.addf %40, %41 : vector<104x1xf32>
    %43 = vector.broadcast %38 : vector<104x1xf32> to vector<104x128xf32>
    %44 = arith.mulf %43, %6 : vector<104x128xf32>
    %45 = arith.subf %17, %44 : vector<104x128xf32>
    %46 = arith.mulf %18, %45 : vector<104x128xf32>
    %cst_15 = arith.constant dense<0.000000e+00> : vector<104xf32>
    %47 = vector.multi_reduction <add>, %46, %cst_15 [1] : vector<104x128xf32> to vector<104xf32>
    %48 = vector.shape_cast %47 : vector<104xf32> to vector<104x1xf32>
    %49 = arith.divf %48, %20 : vector<104x1xf32>
    %50 = arith.mulf %38, %10 : vector<104x1xf32>
    %51 = arith.subf %21, %50 : vector<104x1xf32>
    %52 = arith.subf %49, %51 : vector<104x1xf32>
    %53 = arith.addf %52, %42 : vector<104x1xf32>
    %54 = arith.mulf %38, %53 : vector<104x1xf32>
    %c104_i32 = arith.constant 104 : i32
    %55 = arith.muli %arg0, %c104_i32 : i32
    %56 = tpu.iota {dimensions = array<i32: 0>} : vector<104x1xi32>
    %57 = vector.broadcast %55 : i32 to vector<104x1xi32>
    %58 = arith.addi %57, %56 : vector<104x1xi32>
    %c200_i32 = arith.constant 200 : i32
    %59 = vector.broadcast %c200_i32 : i32 to vector<104x1xi32>
    %60 = arith.cmpi slt, %58, %59 : vector<104x1xi32>
    %cst_16 = arith.constant 0.000000e+00 : f32
    %61 = vector.broadcast %cst_16 : f32 to vector<104x1xf32>
    %62 = arith.select %60, %54, %61 : vector<104x1xi1>, vector<104x1xf32>
    %63 = vector.shape_cast %62 : vector<104x1xf32> to vector<1x104x1xf32>
    %cst_17 = arith.constant dense<0.000000e+00> : vector<1xf32>
    %64 = vector.multi_reduction <add>, %63, %cst_17 [1, 2] : vector<1x104x1xf32> to vector<1xf32>
    %65 = vector.shape_cast %64 : vector<1xf32> to vector<1x1x1xf32>
    %66 = vector.extract %65[0, 0, 0] : f32 from vector<1x1x1xf32>
    %67 = vector.broadcast %66 : f32 to vector<1x8x128xf32>
    %c0_18 = arith.constant 0 : index
    %c0_19 = arith.constant 0 : index
    %c0_20 = arith.constant 0 : index
    %68 = vector.load %arg5[%c0_18, %c0_19, %c0_20] : memref<1x8x128xf32, #tpu.memory_space<vmem>>, vector<1x8x128xf32>
    tpu.vector_store %arg5[%c0_18, %c0_19, %c0_20], %67 {strides = array<i32>} : memref<1x8x128xf32, #tpu.memory_space<vmem>>, vector<1x8x128xf32>,
    return
  }
  func.func @transform_0(%arg0: i32) -> (i32, i32) {
    %c0_i32 = arith.constant 0 : i32
    %c0_i32_0 = arith.constant 0 : i32
    return %arg0, %c0_i32 : i32, i32
  }
  func.func @transform_1(%arg0: i32) -> (i32, i32) {
    %c0_i32 = arith.constant 0 : i32
    %c0_i32_0 = arith.constant 0 : i32
    return %arg0, %c0_i32 : i32, i32
  }
  func.func @transform_2(%arg0: i32) -> (i32, i32) {
    %c0_i32 = arith.constant 0 : i32
    %c0_i32_0 = arith.constant 0 : i32
    return %arg0, %c0_i32 : i32, i32
  }
  func.func @transform_3(%arg0: i32) -> i32 {
    %c0_i32 = arith.constant 0 : i32
    %c0_i32_0 = arith.constant 0 : i32
    return %c0_i32 : i32
  }
  func.func @transform_4(%arg0: i32) -> (i32, i32, i32) {
    %c0_i32 = arith.constant 0 : i32
    %c0_i32_0 = arith.constant 0 : i32
    %c0_i32_1 = arith.constant 0 : i32
    return %arg0, %c0_i32, %c0_i32_0 : i32, i32, i32
  }
}

</mosaic_0001>

<llo_original>
// kernel: tpu_custom_call.1
$region0: #{tpu_custom_call.1}
  #allocation0 [shape = 'u32[]', space=smem, size = 0x4, offset = 0x4, fixed_abs, tag = 'smem constant byte address 0x4 - core index']
  #allocation1 [shape = 'u32[72,128]{1,0:T(1,128)}', space=vmem, size = 0x9000, scoped, tag = 'internal scratch']
  %s0 = inlined_call_operand.vmem [shape: f32[200,128], index: 0, kind: input, shape index: {}]
  %s1 = inlined_call_operand.hbm [shape: f32[200,128], index: 1, kind: input, shape index: {}]
  %s2 = inlined_call_operand.vmem [shape: s32[200,1], index: 2, kind: input, shape index: {}]
  %s3 = inlined_call_operand.vmem [shape: f32[2], index: 3, kind: input, shape index: {}]
  %s4 = inlined_call_operand.hbm [shape: f32[2,8,128], index: 4, kind: output, shape index: {}]
  %s5 = sld [smem:[#allocation0]]
  $region57: #{tpu_custom_call.1} parent=0
    _
  %s7 = ssub.s32 1, %s5
  %s8 = scalar_select 0, %s7, %s5
  $region1: #{tpu_custom_call.1} parent=0
    #allocation2 [shape = 'u8[106496]{0}', space=vmem, size = 0x1a000, scoped, tag = 'input window, operand 1']
    #allocation3 [shape = 's32[2]{0}', space=sflag, size = 0x8, scoped, tag = 'scoped memory for tpu_custom_call.1']
    #allocation4 [shape = 's32[2]{0}', space=sflag, size = 0x8, scoped, tag = 'scoped memory for tpu_custom_call.1']
    #allocation5 [shape = 's32[2]{0}', space=sflag, size = 0x8, scoped, tag = 'scoped memory for tpu_custom_call.1']
    #allocation6 [shape = 'u8[512]{0}', space=smem, size = 0x200, scoped, tag = 'input window, operand 3, single buffered']
    #allocation7 [shape = 'u8[8192]{0}', space=vmem, size = 0x2000, scoped, tag = 'output window, operand 0']
    %9 = vsyncpa [#allocation3], 0
    %s10 = scalar_lea.sflag [#allocation3], 1
    %11 = vsyncpa %s10, 0
    %12 = vsyncpa [#allocation5], 0
    %13 = vsyncpa [#allocation4], 0
    %s14 = scalar_lea.sflag [#allocation4], 1
    %15 = vsyncpa %s14, 0
    loop: start=0, step=1, limit=4
    $region2: #{tpu_custom_call.1} parent=1 // loop_pre_header
      _
    $region3: #{tpu_custom_call.1} parent=1 // loop_header
      %s17 = sphi 0, %s21
      %p18 = scmp.ge.s32.totalorder %s17, 4
      %s27 = sphi 0, %s29
      %s30 = sphi 0, %s27
      %s31 = sphi 0, %s30
      %s47 = sphi 0, %s31
      %s53 = sphi 0, %s55
      %s56 = sphi 0, %s53
      %s57 = sphi 0, %s56
      %s73 = sphi 0, %s57
      %s79 = sphi 0, %s81
      %s82 = sphi 0, %s79
      %s83 = sphi 0, %s82
      %s99 = sphi 0, %s83
      %s103 = sphi 0, %s103
      %s105 = sphi 0, %s103
      %s106 = sphi 0, %s105
      %s120 = sphi 0, %s106
      %s126 = sphi 0, %s128
      %s129 = sphi 0, %s126
      %s130 = sphi 0, %s129
      %s146 = sphi 0, %s130
    $region4: #{tpu_custom_call.1} parent=1 // loop_header_branch
      %20 = sbr.rel (%p18) target = $region8
    $region5: #{tpu_custom_call.1} parent=1 // loop_body
      %s22 = ssub.s32 %s17, 1
      %s23 = ssub.s32 %s17, 2
      %s24 = sadd.s32 %s17, 1
      %s25 = ssub.s32 %s17, %s24
      %p26 = scmp.eq.s32.totalorder %s25, 0
      %s28 = sadd.s32 %s27, 1
      %s29 = scalar_select %p26, %s27, %s28
      %p32 = pneg %p26
      %p33 = scmp.eq.s32.totalorder %s17, 1
      %p34 = por %p32, %p33
      %p35 = scmp.ne.s32.totalorder %s27, %s30
      %p36 = scmp.eq.s32.totalorder %s17, 0
      %p37 = por %p35, %p36
      %p38 = scmp.ne.s32.totalorder %s27, %s30
      %p39 = scmp.eq.s32.totalorder %s22, 1
      %p40 = por %p38, %p39
      %p41 = scmp.ne.s32.totalorder %s30, %s31
      %p42 = scmp.eq.s32.totalorder %s22, 0
      %p43 = por %p41, %p42
      %p44 = scmp.ne.s32.totalorder %s30, %s31
      %p45 = scmp.eq.s32.totalorder %s23, 1
      %p46 = por %p44, %p45
      %p48 = scmp.ne.s32.totalorder %s31, %s47
      %p49 = scmp.eq.s32.totalorder %s23, 0
      %p50 = por %p48, %p49
      %s51 = ssub.s32 %s17, %s24
      %p52 = scmp.eq.s32.totalorder %s51, 0
      %s54 = sadd.s32 %s53, 1
      %s55 = scalar_select %p52, %s53, %s54
      %p58 = pneg %p52
      %p59 = scmp.eq.s32.totalorder %s17, 1
      %p60 = por %p58, %p59
      %p61 = scmp.ne.s32.totalorder %s53, %s56
      %p62 = scmp.eq.s32.totalorder %s17, 0
      %p63 = por %p61, %p62
      %p64 = scmp.ne.s32.totalorder %s53, %s56
      %p65 = scmp.eq.s32.totalorder %s22, 1
      %p66 = por %p64, %p65
      %p67 = scmp.ne.s32.totalorder %s56, %s57
      %p68 = scmp.eq.s32.totalorder %s22, 0
      %p69 = por %p67, %p68
      %p70 = scmp.ne.s32.totalorder %s56, %s57
      %p71 = scmp.eq.s32.totalorder %s23, 1
      %p72 = por %p70, %p71
      %p74 = scmp.ne.s32.totalorder %s57, %s73
      %p75 = scmp.eq.s32.totalorder %s23, 0
      %p76 = por %p74, %p75
      %s77 = ssub.s32 %s17, %s24
      %p78 = scmp.eq.s32.totalorder %s77, 0
      %s80 = sadd.s32 %s79, 1
      %s81 = scalar_select %p78, %s79, %s80
      %p84 = pneg %p78
      %p85 = scmp.eq.s32.totalorder %s17, 1
      %p86 = por %p84, %p85
      %p87 = scmp.ne.s32.totalorder %s79, %s82
      %p88 = scmp.eq.s32.totalorder %s17, 0
      %p89 = por %p87, %p88
      %p90 = scmp.ne.s32.totalorder %s79, %s82
      %p91 = scmp.eq.s32.totalorder %s22, 1
      %p92 = por %p90, %p91
      %p93 = scmp.ne.s32.totalorder %s82, %s83
      %p94 = scmp.eq.s32.totalorder %s22, 0
      %p95 = por %p93, %p94
      %p96 = scmp.ne.s32.totalorder %s82, %s83
      %p97 = scmp.eq.s32.totalorder %s23, 1
      %p98 = por %p96, %p97
      %p100 = scmp.ne.s32.totalorder %s83, %s99
      %p101 = scmp.eq.s32.totalorder %s23, 0
      %p102 = por %p100, %p101
      %s104 = sadd.s32 %s103, 1
      %p107 = scmp.eq.s32.totalorder %s17, 1
      %p108 = scmp.ne.s32.totalorder %s103, %s105
      %p109 = scmp.eq.s32.totalorder %s17, 0
      %p110 = por %p108, %p109
      %p111 = scmp.ne.s32.totalorder %s103, %s105
      %p112 = scmp.eq.s32.totalorder %s22, 1
      %p113 = por %p111, %p112
      %p114 = scmp.ne.s32.totalorder %s105, %s106
      %p115 = scmp.eq.s32.totalorder %s22, 0
      %p116 = por %p114, %p115
      %p117 = scmp.ne.s32.totalorder %s105, %s106
      %p118 = scmp.eq.s32.totalorder %s23, 1
      %p119 = por %p117, %p118
      %p121 = scmp.ne.s32.totalorder %s106, %s120
      %p122 = scmp.eq.s32.totalorder %s23, 0
      %p123 = por %p121, %p122
      %s124 = ssub.s32 %s17, %s24
      %p125 = scmp.eq.s32.totalorder %s124, 0
      %s127 = sadd.s32 %s126, 1
      %s128 = scalar_select %p125, %s126, %s127
      %p131 = pneg %p125
      %p132 = scmp.eq.s32.totalorder %s17, 1
      %p133 = por %p131, %p132
      %p134 = scmp.ne.s32.totalorder %s126, %s129
      %p135 = scmp.eq.s32.totalorder %s17, 0
      %p136 = por %p134, %p135
      %p137 = scmp.ne.s32.totalorder %s126, %s129
      %p138 = scmp.eq.s32.totalorder %s22, 1
      %p139 = por %p137, %p138
      %p140 = scmp.ne.s32.totalorder %s129, %s130
      %p141 = scmp.eq.s32.totalorder %s22, 0
      %p142 = por %p140, %p141
      %p143 = scmp.ne.s32.totalorder %s129, %s130
      %p144 = scmp.eq.s32.totalorder %s23, 1
      %p145 = por %p143, %p144
      %p147 = scmp.ne.s32.totalorder %s130, %s146
      %p148 = scmp.eq.s32.totalorder %s23, 0
      %p149 = por %p147, %p148
      %p150 = scmp.le.s32.totalorder 1, %s17
      %p151 = scmp.lt.s32.totalorder %s17, 3
      %p152 = pnand %p150, %p151
      %p153 = pneg %p152
      // Predicated region
      $region9: #{tpu_custom_call.1} parent=5 // pred_check
        _
      $region10: #{tpu_custom_call.1} parent=5 // pred_check_branch
        %155 = sbr.rel (%p152) target = $region12
      $region11: #{tpu_custom_call.1} parent=5 // pred_region
        %s156 = ssub.s32 %s17, 1
        // Predicated region
        $region13: #{tpu_custom_call.1} parent=11 // pred_check
          %p157 = pneg %p116
        $region14: #{tpu_custom_call.1} parent=11 // pred_check_branch
          %159 = sbr.rel (%p157) target = $region16
        $region15: #{tpu_custom_call.1} parent=11 // pred_region
          %161 = vsyncadd [#allocation5], 0
          %s163 = sshll.u32 %s3, 4
          %s164 = int_to_ptr.vmem [resolvable:$true] %s163
          %166 = dma.vmem_to_smem %s164, 16, [#allocation6], [#allocation5]
        $region16: #{tpu_custom_call.1} parent=11 // pred_fallthru
          _
      $region12: #{tpu_custom_call.1} parent=5 // pred_fallthru
        _
      %p167 = scmp.lt.s32.totalorder %s17, 2
      // Predicated region
      $region17: #{tpu_custom_call.1} parent=5 // pred_check
        %p168 = pneg %p167
      $region18: #{tpu_custom_call.1} parent=5 // pred_check_branch
        %170 = sbr.rel (%p168) target = $region20
      $region19: #{tpu_custom_call.1} parent=5 // pred_region
        // Predicated region
        $region21: #{tpu_custom_call.1} parent=19 // pred_check
          %p171 = pneg %p37
        $region22: #{tpu_custom_call.1} parent=19 // pred_check_branch
          %173 = sbr.rel (%p171) target = $region24
        $region23: #{tpu_custom_call.1} parent=19 // pred_region
          %s174 = smul.u32 13, %s17
          %s175 = ssub.s32 25, %s174
          %p176 = scmp.lt.s32.totalorder %s175, 13
          %s177 = scalar_select %p176, %s175, 13
          %s178 = smul.u32 8, %s177
          %p179 = scmp.lt.s32.totalorder %s174, 24
          %s180 = scalar_select %p179, %s174, 24
          %s181 = smul.addr %s180, 8
          %s182 = scalar_lea.vmem %s0, %s181
          %s183 = smul.u32 13, %s17
          %s184 = ssub.s32 25, %s183
          %p185 = scmp.lt.s32.totalorder %s184, 13
          %s186 = scalar_select %p185, %s184, 13
          %s187 = smul.u32 8, %s186
        $region24: #{tpu_custom_call.1} parent=19 // pred_fallthru
          _
        // Predicated region
        $region25: #{tpu_custom_call.1} parent=19 // pred_check
          %p188 = pneg %p63
        $region26: #{tpu_custom_call.1} parent=19 // pred_check_branch
          %190 = sbr.rel (%p188) target = $region28
        $region27: #{tpu_custom_call.1} parent=19 // pred_region
          %s191 = sand.u32 %s53, 1
          %s192 = scalar_lea.sflag [#allocation3], %s191
          %s193 = sand.u32 %s53, 1
          %s194 = smul.addr %s193, 104
          %s195 = scalar_lea.vmem [#allocation2], %s194
          %s196 = smul.u32 13, %s17
          %s197 = ssub.s32 25, %s196
          %p198 = scmp.lt.s32.totalorder %s197, 13
          %s199 = scalar_select %p198, %s197, 13
          %s200 = smul.u32 8, %s199
          %s201 = ssub.s32 104, %s200
          %s202 = sshll.u32 %s201, 4
          %203 = vsyncadd %s192, %s202
          %p204 = scmp.ne.s32.totalorder 0, %s200
          %s205 = smul.addr %s196, 8
          %s206 = scalar_lea.hbm %s1, %s205
          %s207 = smul.u32 8, %s199
          %s208 = sshll.u32 %s206, 4
          %s209 = int_to_ptr.hbm [resolvable:$true] %s208
          %s210 = sshll.u32 %s195, 4
          %s211 = int_to_ptr.vmem [resolvable:$true] %s210
          %s212 = sshll.u32 %s207, 4
          %216 = dma.hbm_to_vmem [thread:$0]  (%p204), %s209, %s212, %s211, %s192, 128, 128, 8
        $region28: #{tpu_custom_call.1} parent=19 // pred_fallthru
          _
        // Predicated region
        $region29: #{tpu_custom_call.1} parent=19 // pred_check
          %p217 = pneg %p89
        $region30: #{tpu_custom_call.1} parent=19 // pred_check_branch
          %219 = sbr.rel (%p217) target = $region32
        $region31: #{tpu_custom_call.1} parent=19 // pred_region
          %s220 = smul.u32 13, %s17
          %s221 = ssub.s32 25, %s220
          %p222 = scmp.lt.s32.totalorder %s221, 13
          %s223 = scalar_select %p222, %s221, 13
          %s224 = smul.u32 8, %s223
          %p225 = scmp.lt.s32.totalorder %s220, 24
          %s226 = scalar_select %p225, %s220, 24
          %s227 = smul.addr %s226, 8
          %s228 = scalar_lea.vmem %s2, %s227
          %s229 = smul.u32 13, %s17
          %s230 = ssub.s32 25, %s229
          %p231 = scmp.lt.s32.totalorder %s230, 13
          %s232 = scalar_select %p231, %s230, 13
          %s233 = smul.u32 8, %s232
        $region32: #{tpu_custom_call.1} parent=19 // pred_fallthru
          _
      $region20: #{tpu_custom_call.1} parent=5 // pred_fallthru
        _
      %p234 = scmp.le.s32.totalorder 1, %s17
      %p235 = scmp.lt.s32.totalorder %s17, 3
      %p236 = pnand %p234, %p235
      %p237 = pneg %p236
      // Predicated region
      $region33: #{tpu_custom_call.1} parent=5 // pred_check
        _
      $region34: #{tpu_custom_call.1} parent=5 // pred_check_branch
        %239 = sbr.rel (%p236) target = $region36
      $region35: #{tpu_custom_call.1} parent=5 // pred_region
        %s240 = ssub.s32 %s17, 1
        %s241 = sand.u32 %s56, 1
        %s242 = scalar_lea.sflag [#allocation3], %s241
        %s243 = sand.u32 %s56, 1
        %s244 = smul.addr %s243, 104
        %s245 = scalar_lea.vmem [#allocation2], %s244
        // Predicated region
        $region37: #{tpu_custom_call.1} parent=35 // pred_check
          %p246 = pneg %p69
        $region38: #{tpu_custom_call.1} parent=35 // pred_check_branch
          %248 = sbr.rel (%p246) target = $region40
        $region39: #{tpu_custom_call.1} parent=35 // pred_region
          %250 = dma.done %s242, 1664
        $region40: #{tpu_custom_call.1} parent=35 // pred_fallthru
          _
        // Predicated region
        $region41: #{tpu_custom_call.1} parent=35 // pred_check
          %p251 = pneg %p116
        $region42: #{tpu_custom_call.1} parent=35 // pred_check_branch
          %253 = sbr.rel (%p251) target = $region44
        $region43: #{tpu_custom_call.1} parent=35 // pred_region
          %255 = dma.done [#allocation5], 16
        $region44: #{tpu_custom_call.1} parent=35 // pred_fallthru
          _
        %256 = sfence
        %s257 = smul.u32 13, %s22
        %s258 = ssub.s32 25, %s257
        %p259 = scmp.lt.s32.totalorder %s258, 13
        %s260 = scalar_select %p259, %s258, 13
        %s261 = smul.u32 8, %s260
        %p262 = scmp.lt.s32.totalorder %s257, 24
        %s263 = scalar_select %p262, %s257, 24
        %s264 = smul.addr %s263, 8
        %s265 = scalar_lea.vmem %s0, %s264
        %p266 = pneg %p43
        %p267 = pneg %p40
        %s268 = sand.u32 %s56, 1
        %s269 = scalar_lea.sflag [#allocation3], %s268
        %s270 = sand.u32 %s56, 1
        %s271 = smul.addr %s270, 104
        %s272 = scalar_lea.vmem [#allocation2], %s271
        %p273 = pneg %p69
        %p274 = pneg %p66
        %s275 = smul.u32 13, %s22
        %s276 = ssub.s32 25, %s275
        %p277 = scmp.lt.s32.totalorder %s276, 13
        %s278 = scalar_select %p277, %s276, 13
        %s279 = smul.u32 8, %s278
        %p280 = scmp.lt.s32.totalorder %s275, 24
        %s281 = scalar_select %p280, %s275, 24
        %s282 = smul.addr %s281, 8
        %s283 = scalar_lea.vmem %s2, %s282
        %p284 = pneg %p95
        %p285 = pneg %p92
        %p286 = pneg %p116
        %p287 = pneg %p113
        %p288 = pneg %p142
        %p289 = pneg %p139
        %s290 = sand.u32 %s129, 1
        %s291 = scalar_lea.sflag [#allocation4], %s290
        %s292 = sand.u32 %s129, 1
        %s293 = smul.addr %s292, 8
        %s294 = scalar_lea.vmem [#allocation7], %s293
        %s295 = smul.u32 13, %s22
        %s296 = ssub.s32 25, %s295
        %p297 = scmp.lt.s32.totalorder %s296, 13
        %s298 = scalar_select %p297, %s296, 13
        %s299 = smul.u32 8, %s298
        %p300 = scmp.lt.s32.totalorder %s295, 24
        %s301 = scalar_select %p300, %s295, 24
        %s302 = smul.addr %s301, 8
        %s303 = scalar_lea.vmem %s0, %s302
        %s304 = smul.u32 13, %s22
        %s305 = ssub.s32 25, %s304
        %p306 = scmp.lt.s32.totalorder %s305, 13
        %s307 = scalar_select %p306, %s305, 13
        %s308 = smul.u32 8, %s307
        %s309 = smul.u32 13, %s22
        %s310 = ssub.s32 25, %s309
        %p311 = scmp.lt.s32.totalorder %s310, 13
        %s312 = scalar_select %p311, %s310, 13
        %s313 = smul.u32 8, %s312
        %s314 = smul.u32 13, %s22
        %s315 = ssub.s32 25, %s314
        %p316 = scmp.lt.s32.totalorder %s315, 13
        %s317 = scalar_select %p316, %s315, 13
        %s318 = smul.u32 8, %s317
        %p319 = scmp.lt.s32.totalorder %s314, 24
        %s320 = scalar_select %p319, %s314, 24
        %s321 = smul.addr %s320, 8
        %s322 = scalar_lea.vmem %s2, %s321
        %s323 = smul.u32 13, %s22
        %s324 = ssub.s32 25, %s323
        %p325 = scmp.lt.s32.totalorder %s324, 13
        %s326 = scalar_select %p325, %s324, 13
        %s327 = smul.u32 8, %s326
        %v328 = vld [vmem:[%s303] sm:$0xff]
        %v329 = vld [vmem:[%s303 + $0x8] sm:$0xff]
        %v330 = vld [vmem:[%s303 + $0x10] sm:$0xff]
        %v331 = vld [vmem:[%s303 + $0x18] sm:$0xff]
        %v332 = vld [vmem:[%s303 + $0x20] sm:$0xff]
        %v333 = vld [vmem:[%s303 + $0x28] sm:$0xff]
        %v334 = vld [vmem:[%s303 + $0x30] sm:$0xff]
        %v335 = vld [vmem:[%s303 + $0x38] sm:$0xff]
        %v336 = vld [vmem:[%s303 + $0x40] sm:$0xff]
        %v337 = vld [vmem:[%s303 + $0x48] sm:$0xff]
        %v338 = vld [vmem:[%s303 + $0x50] sm:$0xff]
        %v339 = vld [vmem:[%s303 + $0x58] sm:$0xff]
        %v340 = vld [vmem:[%s303 + $0x60] sm:$0xff]
        %v341 = vmul.f32 %v328, 0.25
        %v342 = vmul.f32 %v329, 0.25
        %v343 = vmul.f32 %v330, 0.25
        %v344 = vmul.f32 %v331, 0.25
        %v345 = vmul.f32 %v332, 0.25
        %v346 = vmul.f32 %v333, 0.25
        %v347 = vmul.f32 %v334, 0.25
        %v348 = vmul.f32 %v335, 0.25
        %v349 = vmul.f32 %v336, 0.25
        %v350 = vmul.f32 %v337, 0.25
        %v351 = vmul.f32 %v338, 0.25
        %v352 = vmul.f32 %v339, 0.25
        %v353 = vmul.f32 %v340, 0.25
        %354 = vmax.xlane.f32.xlu0 %v341
        %v355 = vpop.xlane.xlu0 %354
        %356 = vmax.xlane.f32.xlu0 %v342
        %v357 = vpop.xlane.xlu0 %356
        %358 = vmax.xlane.f32.xlu0 %v343
        %v359 = vpop.xlane.xlu0 %358
        %360 = vmax.xlane.f32.xlu0 %v344
        %v361 = vpop.xlane.xlu0 %360
        %362 = vmax.xlane.f32.xlu0 %v345
        %v363 = vpop.xlane.xlu0 %362
        %364 = vmax.xlane.f32.xlu0 %v346
        %v365 = vpop.xlane.xlu0 %364
        %366 = vmax.xlane.f32.xlu0 %v347
        %v367 = vpop.xlane.xlu0 %366
        %368 = vmax.xlane.f32.xlu0 %v348
        %v369 = vpop.xlane.xlu0 %368
        %370 = vmax.xlane.f32.xlu0 %v349
        %v371 = vpop.xlane.xlu0 %370
        %372 = vmax.xlane.f32.xlu0 %v350
        %v373 = vpop.xlane.xlu0 %372
        %374 = vmax.xlane.f32.xlu0 %v351
        %v375 = vpop.xlane.xlu0 %374
        %376 = vmax.xlane.f32.xlu0 %v352
        %v377 = vpop.xlane.xlu0 %376
        %378 = vmax.xlane.f32.xlu0 %v353
        %v379 = vpop.xlane.xlu0 %378
        %v380 = vsub.f32 %v341, %v355
        %v381 = vsub.f32 %v342, %v357
        %v382 = vsub.f32 %v343, %v359
        %v383 = vsub.f32 %v344, %v361
        %v384 = vsub.f32 %v345, %v363
        %v385 = vsub.f32 %v346, %v365
        %v386 = vsub.f32 %v347, %v367
        %v387 = vsub.f32 %v348, %v369
        %v388 = vsub.f32 %v349, %v371
        %v389 = vsub.f32 %v350, %v373
        %v390 = vsub.f32 %v351, %v375
        %v391 = vsub.f32 %v352, %v377
        %v392 = vsub.f32 %v353, %v379
        %v393 = vmul.f32 %v380, 1.442695
        %v394 = vpow.pop %v393
        %v395 = vmul.f32 %v381, 1.442695
        %v396 = vpow.pop %v395
        %v397 = vmul.f32 %v382, 1.442695
        %v398 = vpow.pop %v397
        %v399 = vmul.f32 %v383, 1.442695
        %v400 = vpow.pop %v399
        %v401 = vmul.f32 %v384, 1.442695
        %v402 = vpow.pop %v401
        %v403 = vmul.f32 %v385, 1.442695
        %v404 = vpow.pop %v403
        %v405 = vmul.f32 %v386, 1.442695
        %v406 = vpow.pop %v405
        %v407 = vmul.f32 %v387, 1.442695
        %v408 = vpow.pop %v407
        %v409 = vmul.f32 %v388, 1.442695
        %v410 = vpow.pop %v409
        %v411 = vmul.f32 %v389, 1.442695
        %v412 = vpow.pop %v411
        %v413 = vmul.f32 %v390, 1.442695
        %v414 = vpow.pop %v413
        %v415 = vmul.f32 %v391, 1.442695
        %v416 = vpow.pop %v415
        %v417 = vmul.f32 %v392, 1.442695
        %v418 = vpow.pop %v417
        %419 = vadd.xlane.f32.xlu0 %v394
        %v420 = vpop.xlane.xlu0 %419
        %421 = vadd.xlane.f32.xlu0 %v396
        %v422 = vpop.xlane.xlu0 %421
        %423 = vadd.xlane.f32.xlu0 %v398
        %v424 = vpop.xlane.xlu0 %423
        %425 = vadd.xlane.f32.xlu0 %v400
        %v426 = vpop.xlane.xlu0 %425
        %427 = vadd.xlane.f32.xlu0 %v402
        %v428 = vpop.xlane.xlu0 %427
        %429 = vadd.xlane.f32.xlu0 %v404
        %v430 = vpop.xlane.xlu0 %429
        %431 = vadd.xlane.f32.xlu0 %v406
        %v432 = vpop.xlane.xlu0 %431
        %433 = vadd.xlane.f32.xlu0 %v408
        %v434 = vpop.xlane.xlu0 %433
        %435 = vadd.xlane.f32.xlu0 %v410
        %v436 = vpop.xlane.xlu0 %435
        %437 = vadd.xlane.f32.xlu0 %v412
        %v438 = vpop.xlane.xlu0 %437
        %439 = vadd.xlane.f32.xlu0 %v414
        %v440 = vpop.xlane.xlu0 %439
        %441 = vadd.xlane.f32.xlu0 %v416
        %v442 = vpop.xlane.xlu0 %441
        %443 = vadd.xlane.f32.xlu0 %v418
        %v444 = vpop.xlane.xlu0 %443
        %v445 = vlog2.pop %v420
        %v446 = vmul.f32 %v445, 0.6931472
        %v447 = vlog2.pop %v422
        %v448 = vmul.f32 %v447, 0.6931472
        %v449 = vlog2.pop %v424
        %v450 = vmul.f32 %v449, 0.6931472
        %v451 = vlog2.pop %v426
        %v452 = vmul.f32 %v451, 0.6931472
        %v453 = vlog2.pop %v428
        %v454 = vmul.f32 %v453, 0.6931472
        %v455 = vlog2.pop %v430
        %v456 = vmul.f32 %v455, 0.6931472
        %v457 = vlog2.pop %v432
        %v458 = vmul.f32 %v457, 0.6931472
        %v459 = vlog2.pop %v434
        %v460 = vmul.f32 %v459, 0.6931472
        %v461 = vlog2.pop %v436
        %v462 = vmul.f32 %v461, 0.6931472
        %v463 = vlog2.pop %v438
        %v464 = vmul.f32 %v463, 0.6931472
        %v465 = vlog2.pop %v440
        %v466 = vmul.f32 %v465, 0.6931472
        %v467 = vlog2.pop %v442
        %v468 = vmul.f32 %v467, 0.6931472
        %v469 = vlog2.pop %v444
        %v470 = vmul.f32 %v469, 0.6931472
        %v471 = vld [vmem:[%s245] sm:$0xff]
        %v472 = vld [vmem:[%s245 + $0x8] sm:$0xff]
        %v473 = vld [vmem:[%s245 + $0x10] sm:$0xff]
        %v474 = vld [vmem:[%s245 + $0x18] sm:$0xff]
        %v475 = vld [vmem:[%s245 + $0x20] sm:$0xff]
        %v476 = vld [vmem:[%s245 + $0x28] sm:$0xff]
        %v477 = vld [vmem:[%s245 + $0x30] sm:$0xff]
        %v478 = vld [vmem:[%s245 + $0x38] sm:$0xff]
        %v479 = vld [vmem:[%s245 + $0x40] sm:$0xff]
        %v480 = vld [vmem:[%s245 + $0x48] sm:$0xff]
        %v481 = vld [vmem:[%s245 + $0x50] sm:$0xff]
        %v482 = vld [vmem:[%s245 + $0x58] sm:$0xff]
        %v483 = vld [vmem:[%s245 + $0x60] sm:$0xff]
        %v484 = vmul.f32 %v471, 0.25
        %v485 = vmul.f32 %v472, 0.25
        %v486 = vmul.f32 %v473, 0.25
        %v487 = vmul.f32 %v474, 0.25
        %v488 = vmul.f32 %v475, 0.25
        %v489 = vmul.f32 %v476, 0.25
        %v490 = vmul.f32 %v477, 0.25
        %v491 = vmul.f32 %v478, 0.25
        %v492 = vmul.f32 %v479, 0.25
        %v493 = vmul.f32 %v480, 0.25
        %v494 = vmul.f32 %v481, 0.25
        %v495 = vmul.f32 %v482, 0.25
        %v496 = vmul.f32 %v483, 0.25
        %497 = vmax.xlane.f32.xlu0 %v484
        %v498 = vpop.xlane.xlu0 %497
        %499 = vmax.xlane.f32.xlu0 %v485
        %v500 = vpop.xlane.xlu0 %499
        %501 = vmax.xlane.f32.xlu0 %v486
        %v502 = vpop.xlane.xlu0 %501
        %503 = vmax.xlane.f32.xlu0 %v487
        %v504 = vpop.xlane.xlu0 %503
        %505 = vmax.xlane.f32.xlu0 %v488
        %v506 = vpop.xlane.xlu0 %505
        %507 = vmax.xlane.f32.xlu0 %v489
        %v508 = vpop.xlane.xlu0 %507
        %509 = vmax.xlane.f32.xlu0 %v490
        %v510 = vpop.xlane.xlu0 %509
        %511 = vmax.xlane.f32.xlu0 %v491
        %v512 = vpop.xlane.xlu0 %511
        %513 = vmax.xlane.f32.xlu0 %v492
        %v514 = vpop.xlane.xlu0 %513
        %515 = vmax.xlane.f32.xlu0 %v493
        %v516 = vpop.xlane.xlu0 %515
        %517 = vmax.xlane.f32.xlu0 %v494
        %v518 = vpop.xlane.xlu0 %517
        %519 = vmax.xlane.f32.xlu0 %v495
        %v520 = vpop.xlane.xlu0 %519
        %521 = vmax.xlane.f32.xlu0 %v496
        %v522 = vpop.xlane.xlu0 %521
        %v523 = vsub.f32 %v484, %v498
        %v524 = vsub.f32 %v485, %v500
        %v525 = vsub.f32 %v486, %v502
        %v526 = vsub.f32 %v487, %v504
        %v527 = vsub.f32 %v488, %v506
        %v528 = vsub.f32 %v489, %v508
        %v529 = vsub.f32 %v490, %v510
        %v530 = vsub.f32 %v491, %v512
        %v531 = vsub.f32 %v492, %v514
        %v532 = vsub.f32 %v493, %v516
        %v533 = vsub.f32 %v494, %v518
        %v534 = vsub.f32 %v495, %v520
        %v535 = vsub.f32 %v496, %v522
        %v536 = vmul.f32 %v523, 1.442695
        %v537 = vpow.pop %v536
        %v538 = vmul.f32 %v524, 1.442695
        %v539 = vpow.pop %v538
        %v540 = vmul.f32 %v525, 1.442695
        %v541 = vpow.pop %v540
        %v542 = vmul.f32 %v526, 1.442695
        %v543 = vpow.pop %v542
        %v544 = vmul.f32 %v527, 1.442695
        %v545 = vpow.pop %v544
        %v546 = vmul.f32 %v528, 1.442695
        %v547 = vpow.pop %v546
        %v548 = vmul.f32 %v529, 1.442695
        %v549 = vpow.pop %v548
        %v550 = vmul.f32 %v530, 1.442695
        %v551 = vpow.pop %v550
        %v552 = vmul.f32 %v531, 1.442695
        %v553 = vpow.pop %v552
        %v554 = vmul.f32 %v532, 1.442695
        %v555 = vpow.pop %v554
        %v556 = vmul.f32 %v533, 1.442695
        %v557 = vpow.pop %v556
        %v558 = vmul.f32 %v534, 1.442695
        %v559 = vpow.pop %v558
        %v560 = vmul.f32 %v535, 1.442695
        %v561 = vpow.pop %v560
        %562 = vadd.xlane.f32.xlu0 %v537
        %v563 = vpop.xlane.xlu0 %562
        %564 = vadd.xlane.f32.xlu0 %v539
        %v565 = vpop.xlane.xlu0 %564
        %566 = vadd.xlane.f32.xlu0 %v541
        %v567 = vpop.xlane.xlu0 %566
        %568 = vadd.xlane.f32.xlu0 %v543
        %v569 = vpop.xlane.xlu0 %568
        %570 = vadd.xlane.f32.xlu0 %v545
        %v571 = vpop.xlane.xlu0 %570
        %572 = vadd.xlane.f32.xlu0 %v547
        %v573 = vpop.xlane.xlu0 %572
        %574 = vadd.xlane.f32.xlu0 %v549
        %v575 = vpop.xlane.xlu0 %574
        %576 = vadd.xlane.f32.xlu0 %v551
        %v577 = vpop.xlane.xlu0 %576
        %578 = vadd.xlane.f32.xlu0 %v553
        %v579 = vpop.xlane.xlu0 %578
        %580 = vadd.xlane.f32.xlu0 %v555
        %v581 = vpop.xlane.xlu0 %580
        %582 = vadd.xlane.f32.xlu0 %v557
        %v583 = vpop.xlane.xlu0 %582
        %584 = vadd.xlane.f32.xlu0 %v559
        %v585 = vpop.xlane.xlu0 %584
        %586 = vadd.xlane.f32.xlu0 %v561
        %v587 = vpop.xlane.xlu0 %586
        %v588 = vlog2.pop %v563
        %v589 = vmul.f32 %v588, 0.6931472
        %v590 = vlog2.pop %v565
        %v591 = vmul.f32 %v590, 0.6931472
        %v592 = vlog2.pop %v567
        %v593 = vmul.f32 %v592, 0.6931472
        %v594 = vlog2.pop %v569
        %v595 = vmul.f32 %v594, 0.6931472
        %v596 = vlog2.pop %v571
        %v597 = vmul.f32 %v596, 0.6931472
        %v598 = vlog2.pop %v573
        %v599 = vmul.f32 %v598, 0.6931472
        %v600 = vlog2.pop %v575
        %v601 = vmul.f32 %v600, 0.6931472
        %v602 = vlog2.pop %v577
        %v603 = vmul.f32 %v602, 0.6931472
        %v604 = vlog2.pop %v579
        %v605 = vmul.f32 %v604, 0.6931472
        %v606 = vlog2.pop %v581
        %v607 = vmul.f32 %v606, 0.6931472
        %v608 = vlog2.pop %v583
        %v609 = vmul.f32 %v608, 0.6931472
        %v610 = vlog2.pop %v585
        %v611 = vmul.f32 %v610, 0.6931472
        %v612 = vlog2.pop %v587
        %v613 = vmul.f32 %v612, 0.6931472
        %v614 = vlaneseq
        %v615 = vand.u32 %v614, 127
        %vm616 = vcmp.ge.f32.partialorder %v523, 0.0
        %vm617 = vcmp.ge.f32.partialorder %v524, 0.0
        %vm618 = vcmp.ge.f32.partialorder %v525, 0.0
        %vm619 = vcmp.ge.f32.partialorder %v526, 0.0
        %vm620 = vcmp.ge.f32.partialorder %v527, 0.0
        %vm621 = vcmp.ge.f32.partialorder %v528, 0.0
        %vm622 = vcmp.ge.f32.partialorder %v529, 0.0
        %vm623 = vcmp.ge.f32.partialorder %v530, 0.0
        %vm624 = vcmp.ge.f32.partialorder %v531, 0.0
        %vm625 = vcmp.ge.f32.partialorder %v532, 0.0
        %vm626 = vcmp.ge.f32.partialorder %v533, 0.0
        %vm627 = vcmp.ge.f32.partialorder %v534, 0.0
        %vm628 = vcmp.ge.f32.partialorder %v535, 0.0
        %v629 = vsel %vm616, %v615, 128
        %v630 = vsel %vm617, %v615, 128
        %v631 = vsel %vm618, %v615, 128
        %v632 = vsel %vm619, %v615, 128
        %v633 = vsel %vm620, %v615, 128
        %v634 = vsel %vm621, %v615, 128
        %v635 = vsel %vm622, %v615, 128
        %v636 = vsel %vm623, %v615, 128
        %v637 = vsel %vm624, %v615, 128
        %v638 = vsel %vm625, %v615, 128
        %v639 = vsel %vm626, %v615, 128
        %v640 = vsel %vm627, %v615, 128
        %v641 = vsel %vm628, %v615, 128
        %v642 = vand.u32 %v629, 65535
        %v643 = vshra.s32 %v629, 16
        %v644 = vcvt.s32.f32 %v642
        %v645 = vcvt.s32.f32 %v643
        %646 = vmin.xlane.f32.xlu0 %v645
        %v647 = vpop.xlane.xlu0 %646
        %vm648 = vcmp.eq.f32.partialorder %v645, %v647
        %v649 = vsel %vm648, %v644, inf
        %650 = vmin.xlane.f32.xlu0 %v649
        %v651 = vpop.xlane.xlu0 %650
        %v652 = vcvt.f32.s32 %v651
        %v653 = vcvt.f32.s32 %v647
        %v654 = vshll.u32 %v653, 16
        %v655 = vadd.s32 %v654, %v652
        %v656 = vand.u32 %v630, 65535
        %v657 = vshra.s32 %v630, 16
        %v658 = vcvt.s32.f32 %v656
        %v659 = vcvt.s32.f32 %v657
        %660 = vmin.xlane.f32.xlu0 %v659
        %v661 = vpop.xlane.xlu0 %660
        %vm662 = vcmp.eq.f32.partialorder %v659, %v661
        %v663 = vsel %vm662, %v658, inf
        %664 = vmin.xlane.f32.xlu0 %v663
        %v665 = vpop.xlane.xlu0 %664
        %v666 = vcvt.f32.s32 %v665
        %v667 = vcvt.f32.s32 %v661
        %v668 = vshll.u32 %v667, 16
        %v669 = vadd.s32 %v668, %v666
        %v670 = vand.u32 %v631, 65535
        %v671 = vshra.s32 %v631, 16
        %v672 = vcvt.s32.f32 %v670
        %v673 = vcvt.s32.f32 %v671
        %674 = vmin.xlane.f32.xlu0 %v673
        %v675 = vpop.xlane.xlu0 %674
        %vm676 = vcmp.eq.f32.partialorder %v673, %v675
        %v677 = vsel %vm676, %v672, inf
        %678 = vmin.xlane.f32.xlu0 %v677
        %v679 = vpop.xlane.xlu0 %678
        %v680 = vcvt.f32.s32 %v679
        %v681 = vcvt.f32.s32 %v675
        %v682 = vshll.u32 %v681, 16
        %v683 = vadd.s32 %v682, %v680
        %v684 = vand.u32 %v632, 65535
        %v685 = vshra.s32 %v632, 16
        %v686 = vcvt.s32.f32 %v684
        %v687 = vcvt.s32.f32 %v685
        %688 = vmin.xlane.f32.xlu0 %v687
        %v689 = vpop.xlane.xlu0 %688
        %vm690 = vcmp.eq.f32.partialorder %v687, %v689
        %v691 = vsel %vm690, %v686, inf
        %692 = vmin.xlane.f32.xlu0 %v691
        %v693 = vpop.xlane.xlu0 %692
        %v694 = vcvt.f32.s32 %v693
        %v695 = vcvt.f32.s32 %v689
        %v696 = vshll.u32 %v695, 16
        %v697 = vadd.s32 %v696, %v694
        %v698 = vand.u32 %v633, 65535
        %v699 = vshra.s32 %v633, 16
        %v700 = vcvt.s32.f32 %v698
        %v701 = vcvt.s32.f32 %v699
        %702 = vmin.xlane.f32.xlu0 %v701
        %v703 = vpop.xlane.xlu0 %702
        %vm704 = vcmp.eq.f32.partialorder %v701, %v703
        %v705 = vsel %vm704, %v700, inf
        %706 = vmin.xlane.f32.xlu0 %v705
        %v707 = vpop.xlane.xlu0 %706
        %v708 = vcvt.f32.s32 %v707
        %v709 = vcvt.f32.s32 %v703
        %v710 = vshll.u32 %v709, 16
        %v711 = vadd.s32 %v710, %v708
        %v712 = vand.u32 %v634, 65535
        %v713 = vshra.s32 %v634, 16
        %v714 = vcvt.s32.f32 %v712
        %v715 = vcvt.s32.f32 %v713
        %716 = vmin.xlane.f32.xlu0 %v715
        %v717 = vpop.xlane.xlu0 %716
        %vm718 = vcmp.eq.f32.partialorder %v715, %v717
        %v719 = vsel %vm718, %v714, inf
        %720 = vmin.xlane.f32.xlu0 %v719
        %v721 = vpop.xlane.xlu0 %720
        %v722 = vcvt.f32.s32 %v721
        %v723 = vcvt.f32.s32 %v717
        %v724 = vshll.u32 %v723, 16
        %v725 = vadd.s32 %v724, %v722
        %v726 = vand.u32 %v635, 65535
        %v727 = vshra.s32 %v635, 16
        %v728 = vcvt.s32.f32 %v726
        %v729 = vcvt.s32.f32 %v727
        %730 = vmin.xlane.f32.xlu0 %v729
        %v731 = vpop.xlane.xlu0 %730
        %vm732 = vcmp.eq.f32.partialorder %v729, %v731
        %v733 = vsel %vm732, %v728, inf
        %734 = vmin.xlane.f32.xlu0 %v733
        %v735 = vpop.xlane.xlu0 %734
        %v736 = vcvt.f32.s32 %v735
        %v737 = vcvt.f32.s32 %v731
        %v738 = vshll.u32 %v737, 16
        %v739 = vadd.s32 %v738, %v736
        %v740 = vand.u32 %v636, 65535
        %v741 = vshra.s32 %v636, 16
        %v742 = vcvt.s32.f32 %v740
        %v743 = vcvt.s32.f32 %v741
        %744 = vmin.xlane.f32.xlu0 %v743
        %v745 = vpop.xlane.xlu0 %744
        %vm746 = vcmp.eq.f32.partialorder %v743, %v745
        %v747 = vsel %vm746, %v742, inf
        %748 = vmin.xlane.f32.xlu0 %v747
        %v749 = vpop.xlane.xlu0 %748
        %v750 = vcvt.f32.s32 %v749
        %v751 = vcvt.f32.s32 %v745
        %v752 = vshll.u32 %v751, 16
        %v753 = vadd.s32 %v752, %v750
        %v754 = vand.u32 %v637, 65535
        %v755 = vshra.s32 %v637, 16
        %v756 = vcvt.s32.f32 %v754
        %v757 = vcvt.s32.f32 %v755
        %758 = vmin.xlane.f32.xlu0 %v757
        %v759 = vpop.xlane.xlu0 %758
        %vm760 = vcmp.eq.f32.partialorder %v757, %v759
        %v761 = vsel %vm760, %v756, inf
        %762 = vmin.xlane.f32.xlu0 %v761
        %v763 = vpop.xlane.xlu0 %762
        %v764 = vcvt.f32.s32 %v763
        %v765 = vcvt.f32.s32 %v759
        %v766 = vshll.u32 %v765, 16
        %v767 = vadd.s32 %v766, %v764
        %v768 = vand.u32 %v638, 65535
        %v769 = vshra.s32 %v638, 16
        %v770 = vcvt.s32.f32 %v768
        %v771 = vcvt.s32.f32 %v769
        %772 = vmin.xlane.f32.xlu0 %v771
        %v773 = vpop.xlane.xlu0 %772
        %vm774 = vcmp.eq.f32.partialorder %v771, %v773
        %v775 = vsel %vm774, %v770, inf
        %776 = vmin.xlane.f32.xlu0 %v775
        %v777 = vpop.xlane.xlu0 %776
        %v778 = vcvt.f32.s32 %v777
        %v779 = vcvt.f32.s32 %v773
        %v780 = vshll.u32 %v779, 16
        %v781 = vadd.s32 %v780, %v778
        %v782 = vand.u32 %v639, 65535
        %v783 = vshra.s32 %v639, 16
        %v784 = vcvt.s32.f32 %v782
        %v785 = vcvt.s32.f32 %v783
        %786 = vmin.xlane.f32.xlu0 %v785
        %v787 = vpop.xlane.xlu0 %786
        %vm788 = vcmp.eq.f32.partialorder %v785, %v787
        %v789 = vsel %vm788, %v784, inf
        %790 = vmin.xlane.f32.xlu0 %v789
        %v791 = vpop.xlane.xlu0 %790
        %v792 = vcvt.f32.s32 %v791
        %v793 = vcvt.f32.s32 %v787
        %v794 = vshll.u32 %v793, 16
        %v795 = vadd.s32 %v794, %v792
        %v796 = vand.u32 %v640, 65535
        %v797 = vshra.s32 %v640, 16
        %v798 = vcvt.s32.f32 %v796
        %v799 = vcvt.s32.f32 %v797
        %800 = vmin.xlane.f32.xlu0 %v799
        %v801 = vpop.xlane.xlu0 %800
        %vm802 = vcmp.eq.f32.partialorder %v799, %v801
        %v803 = vsel %vm802, %v798, inf
        %804 = vmin.xlane.f32.xlu0 %v803
        %v805 = vpop.xlane.xlu0 %804
        %v806 = vcvt.f32.s32 %v805
        %v807 = vcvt.f32.s32 %v801
        %v808 = vshll.u32 %v807, 16
        %v809 = vadd.s32 %v808, %v806
        %v810 = vand.u32 %v641, 65535
        %v811 = vshra.s32 %v641, 16
        %v812 = vcvt.s32.f32 %v810
        %v813 = vcvt.s32.f32 %v811
        %814 = vmin.xlane.f32.xlu0 %v813
        %v815 = vpop.xlane.xlu0 %814
        %vm816 = vcmp.eq.f32.partialorder %v813, %v815
        %v817 = vsel %vm816, %v812, inf
        %818 = vmin.xlane.f32.xlu0 %v817
        %v819 = vpop.xlane.xlu0 %818
        %v820 = vcvt.f32.s32 %v819
        %v821 = vcvt.f32.s32 %v815
        %v822 = vshll.u32 %v821, 16
        %v823 = vadd.s32 %v822, %v820
        %s824 = sld [smem:[#allocation6]]
        %s825 = sld [smem:[#allocation6 + $0x1]]
        %v826 = vld [vmem:[%s322] sm:$0xff]
        %v827 = vld [vmem:[%s322 + $0x8] sm:$0xff]
        %v828 = vld [vmem:[%s322 + $0x10] sm:$0xff]
        %v829 = vld [vmem:[%s322 + $0x18] sm:$0xff]
        %v830 = vld [vmem:[%s322 + $0x20] sm:$0xff]
        %v831 = vld [vmem:[%s322 + $0x28] sm:$0xff]
        %v832 = vld [vmem:[%s322 + $0x30] sm:$0xff]
        %v833 = vld [vmem:[%s322 + $0x38] sm:$0xff]
        %v834 = vld [vmem:[%s322 + $0x40] sm:$0xff]
        %v835 = vld [vmem:[%s322 + $0x48] sm:$0xff]
        %v836 = vld [vmem:[%s322 + $0x50] sm:$0xff]
        %v837 = vld [vmem:[%s322 + $0x58] sm:$0xff]
        %v838 = vld [vmem:[%s322 + $0x60] sm:$0xff]
        %vm839 = vcmp.eq.s32.totalorder %v826, %v655
        %vm840 = vcmp.eq.s32.totalorder %v827, %v669
        %vm841 = vcmp.eq.s32.totalorder %v828, %v683
        %vm842 = vcmp.eq.s32.totalorder %v829, %v697
        %vm843 = vcmp.eq.s32.totalorder %v830, %v711
        %vm844 = vcmp.eq.s32.totalorder %v831, %v725
        %vm845 = vcmp.eq.s32.totalorder %v832, %v739
        %vm846 = vcmp.eq.s32.totalorder %v833, %v753
        %vm847 = vcmp.eq.s32.totalorder %v834, %v767
        %vm848 = vcmp.eq.s32.totalorder %v835, %v781
        %vm849 = vcmp.eq.s32.totalorder %v836, %v795
        %vm850 = vcmp.eq.s32.totalorder %v837, %v809
        %vm851 = vcmp.eq.s32.totalorder %v838, %v823
        %v852 = vsel %vm839, 1, 0
        %v853 = vsel %vm840, 1, 0
        %v854 = vsel %vm841, 1, 0
        %v855 = vsel %vm842, 1, 0
        %v856 = vsel %vm843, 1, 0
        %v857 = vsel %vm844, 1, 0
        %v858 = vsel %vm845, 1, 0
        %v859 = vsel %vm846, 1, 0
        %v860 = vsel %vm847, 1, 0
        %v861 = vsel %vm848, 1, 0
        %v862 = vsel %vm849, 1, 0
        %v863 = vsel %vm850, 1, 0
        %v864 = vsel %vm851, 1, 0
        %v865 = vcvt.s32.f32 %v852
        %v866 = vcvt.s32.f32 %v853
        %v867 = vcvt.s32.f32 %v854
        %v868 = vcvt.s32.f32 %v855
        %v869 = vcvt.s32.f32 %v856
        %v870 = vcvt.s32.f32 %v857
        %v871 = vcvt.s32.f32 %v858
        %v872 = vcvt.s32.f32 %v859
        %v873 = vcvt.s32.f32 %v860
        %v874 = vcvt.s32.f32 %v861
        %v875 = vcvt.s32.f32 %v862
        %v876 = vcvt.s32.f32 %v863
        %v877 = vcvt.s32.f32 %v864
        %v878 = vadd.f32 %v865, 1.0
        %v879 = vadd.f32 %v866, 1.0
        %v880 = vadd.f32 %v867, 1.0
        %v881 = vadd.f32 %v868, 1.0
        %v882 = vadd.f32 %v869, 1.0
        %v883 = vadd.f32 %v870, 1.0
        %v884 = vadd.f32 %v871, 1.0
        %v885 = vadd.f32 %v872, 1.0
        %v886 = vadd.f32 %v873, 1.0
        %v887 = vadd.f32 %v874, 1.0
        %v888 = vadd.f32 %v875, 1.0
        %v889 = vadd.f32 %v876, 1.0
        %v890 = vadd.f32 %v877, 1.0
        %v891 = vstv %s824
        %v892 = vmul.f32 %v878, %v891
        %v893 = vmul.f32 %v879, %v891
        %v894 = vmul.f32 %v880, %v891
        %v895 = vmul.f32 %v881, %v891
        %v896 = vmul.f32 %v882, %v891
        %v897 = vmul.f32 %v883, %v891
        %v898 = vmul.f32 %v884, %v891
        %v899 = vmul.f32 %v885, %v891
        %v900 = vmul.f32 %v886, %v891
        %v901 = vmul.f32 %v887, %v891
        %v902 = vmul.f32 %v888, %v891
        %v903 = vmul.f32 %v889, %v891
        %v904 = vmul.f32 %v890, %v891
        %v905 = vmul.f32 %v865, 0.6931472
        %v906 = vmul.f32 %v866, 0.6931472
        %v907 = vmul.f32 %v867, 0.6931472
        %v908 = vmul.f32 %v868, 0.6931472
        %v909 = vmul.f32 %v869, 0.6931472
        %v910 = vmul.f32 %v870, 0.6931472
        %v911 = vmul.f32 %v871, 0.6931472
        %v912 = vmul.f32 %v872, 0.6931472
        %v913 = vmul.f32 %v873, 0.6931472
        %v914 = vmul.f32 %v874, 0.6931472
        %v915 = vmul.f32 %v875, 0.6931472
        %v916 = vmul.f32 %v876, 0.6931472
        %v917 = vmul.f32 %v877, 0.6931472
        %v918 = vstv %s825
        %v919 = vadd.f32 %v905, %v918
        %v920 = vadd.f32 %v906, %v918
        %v921 = vadd.f32 %v907, %v918
        %v922 = vadd.f32 %v908, %v918
        %v923 = vadd.f32 %v909, %v918
        %v924 = vadd.f32 %v910, %v918
        %v925 = vadd.f32 %v911, %v918
        %v926 = vadd.f32 %v912, %v918
        %v927 = vadd.f32 %v913, %v918
        %v928 = vadd.f32 %v914, %v918
        %v929 = vadd.f32 %v915, %v918
        %v930 = vadd.f32 %v916, %v918
        %v931 = vadd.f32 %v917, %v918
        %933 = vset.pattern.permute.xlu0 0
        %934 = vperm.xlu0 %933, %v892
        %v935 = vpop.permute.xlu0 %934
        %938 = vset.pattern.permute.xlu0 0
        %939 = vperm.xlu0 %938, %v893
        %v940 = vpop.permute.xlu0 %939
        %943 = vset.pattern.permute.xlu0 0
        %944 = vperm.xlu0 %943, %v894
        %v945 = vpop.permute.xlu0 %944
        %948 = vset.pattern.permute.xlu0 0
        %949 = vperm.xlu0 %948, %v895
        %v950 = vpop.permute.xlu0 %949
        %953 = vset.pattern.permute.xlu0 0
        %954 = vperm.xlu0 %953, %v896
        %v955 = vpop.permute.xlu0 %954
        %958 = vset.pattern.permute.xlu0 0
        %959 = vperm.xlu0 %958, %v897
        %v960 = vpop.permute.xlu0 %959
        %963 = vset.pattern.permute.xlu0 0
        %964 = vperm.xlu0 %963, %v898
        %v965 = vpop.permute.xlu0 %964
        %968 = vset.pattern.permute.xlu0 0
        %969 = vperm.xlu0 %968, %v899
        %v970 = vpop.permute.xlu0 %969
        %973 = vset.pattern.permute.xlu0 0
        %974 = vperm.xlu0 %973, %v900
        %v975 = vpop.permute.xlu0 %974
        %978 = vset.pattern.permute.xlu0 0
        %979 = vperm.xlu0 %978, %v901
        %v980 = vpop.permute.xlu0 %979
        %983 = vset.pattern.permute.xlu0 0
        %984 = vperm.xlu0 %983, %v902
        %v985 = vpop.permute.xlu0 %984
        %988 = vset.pattern.permute.xlu0 0
        %989 = vperm.xlu0 %988, %v903
        %v990 = vpop.permute.xlu0 %989
        %993 = vset.pattern.permute.xlu0 0
        %994 = vperm.xlu0 %993, %v904
        %v995 = vpop.permute.xlu0 %994
        %v997 = vmul.f32 %v935, %v380
        %v998 = vmul.f32 %v940, %v381
        %v999 = vmul.f32 %v945, %v382
        %v1000 = vmul.f32 %v950, %v383
        %v1001 = vmul.f32 %v955, %v384
        %v1002 = vmul.f32 %v960, %v385
        %v1003 = vmul.f32 %v965, %v386
        %v1004 = vmul.f32 %v970, %v387
        %v1005 = vmul.f32 %v975, %v388
        %v1006 = vmul.f32 %v980, %v389
        %v1007 = vmul.f32 %v985, %v390
        %v1008 = vmul.f32 %v990, %v391
        %v1009 = vmul.f32 %v995, %v392
        %v1010 = vsub.f32 %v523, %v997
        %v1011 = vsub.f32 %v524, %v998
        %v1012 = vsub.f32 %v525, %v999
        %v1013 = vsub.f32 %v526, %v1000
        %v1014 = vsub.f32 %v527, %v1001
        %v1015 = vsub.f32 %v528, %v1002
        %v1016 = vsub.f32 %v529, %v1003
        %v1017 = vsub.f32 %v530, %v1004
        %v1018 = vsub.f32 %v531, %v1005
        %v1019 = vsub.f32 %v532, %v1006
        %v1020 = vsub.f32 %v533, %v1007
        %v1021 = vsub.f32 %v534, %v1008
        %v1022 = vsub.f32 %v535, %v1009
        %v1023 = vmul.f32 %v537, %v1010
        %v1024 = vmul.f32 %v539, %v1011
        %v1025 = vmul.f32 %v541, %v1012
        %v1026 = vmul.f32 %v543, %v1013
        %v1027 = vmul.f32 %v545, %v1014
        %v1028 = vmul.f32 %v547, %v1015
        %v1029 = vmul.f32 %v549, %v1016
        %v1030 = vmul.f32 %v551, %v1017
        %v1031 = vmul.f32 %v553, %v1018
        %v1032 = vmul.f32 %v555, %v1019
        %v1033 = vmul.f32 %v557, %v1020
        %v1034 = vmul.f32 %v559, %v1021
        %v1035 = vmul.f32 %v561, %v1022
        %1036 = vadd.xlane.f32.xlu0 %v1023
        %v1037 = vpop.xlane.xlu0 %1036
        %1038 = vadd.xlane.f32.xlu0 %v1024
        %v1039 = vpop.xlane.xlu0 %1038
        %1040 = vadd.xlane.f32.xlu0 %v1025
        %v1041 = vpop.xlane.xlu0 %1040
        %1042 = vadd.xlane.f32.xlu0 %v1026
        %v1043 = vpop.xlane.xlu0 %1042
        %1044 = vadd.xlane.f32.xlu0 %v1027
        %v1045 = vpop.xlane.xlu0 %1044
        %1046 = vadd.xlane.f32.xlu0 %v1028
        %v1047 = vpop.xlane.xlu0 %1046
        %1048 = vadd.xlane.f32.xlu0 %v1029
        %v1049 = vpop.xlane.xlu0 %1048
        %1050 = vadd.xlane.f32.xlu0 %v1030
        %v1051 = vpop.xlane.xlu0 %1050
        %1052 = vadd.xlane.f32.xlu0 %v1031
        %v1053 = vpop.xlane.xlu0 %1052
        %1054 = vadd.xlane.f32.xlu0 %v1032
        %v1055 = vpop.xlane.xlu0 %1054
        %1056 = vadd.xlane.f32.xlu0 %v1033
        %v1057 = vpop.xlane.xlu0 %1056
        %1058 = vadd.xlane.f32.xlu0 %v1034
        %v1059 = vpop.xlane.xlu0 %1058
        %1060 = vadd.xlane.f32.xlu0 %v1035
        %v1061 = vpop.xlane.xlu0 %1060
        %v1062 = vrcp.pop %v563
        %v1063 = vmul.f32 %v563, %v1062
        %v1064 = vsub.f32 1.0, %v1063
        %v1065 = vmul.f32 %v1062, %v1064
        %v1066 = vadd.f32 %v1062, %v1065
        %vm1067 = vweird.f32 %v563
        %vm1068 = vweird.f32 %v1062
        %vm1069 = vmor %vm1067, %vm1068
        %v1070 = vsel %vm1069, %v1062, %v1066
        %v1071 = vand.u32 2147483647, %v563
        %vm1072 = vcmp.eq.f32.partialorder %v1071, 8.507059e+37
        %v1073 = vand.u32 %v563, 2147483648
        %v1074 = vor.u32 1.1754944e-38, %v1073
        %v1075 = vsel %vm1072, %v1074, %v1070
        %v1076 = vmul.f32 %v1037, %v1075
        %v1077 = vrcp.pop %v565
        %v1078 = vmul.f32 %v565, %v1077
        %v1079 = vsub.f32 1.0, %v1078
        %v1080 = vmul.f32 %v1077, %v1079
        %v1081 = vadd.f32 %v1077, %v1080
        %vm1082 = vweird.f32 %v565
        %vm1083 = vweird.f32 %v1077
        %vm1084 = vmor %vm1082, %vm1083
        %v1085 = vsel %vm1084, %v1077, %v1081
        %v1086 = vand.u32 2147483647, %v565
        %vm1087 = vcmp.eq.f32.partialorder %v1086, 8.507059e+37
        %v1088 = vand.u32 %v565, 2147483648
        %v1089 = vor.u32 1.1754944e-38, %v1088
        %v1090 = vsel %vm1087, %v1089, %v1085
        %v1091 = vmul.f32 %v1039, %v1090
        %v1092 = vrcp.pop %v567
        %v1093 = vmul.f32 %v567, %v1092
        %v1094 = vsub.f32 1.0, %v1093
        %v1095 = vmul.f32 %v1092, %v1094
        %v1096 = vadd.f32 %v1092, %v1095
        %vm1097 = vweird.f32 %v567
        %vm1098 = vweird.f32 %v1092
        %vm1099 = vmor %vm1097, %vm1098
        %v1100 = vsel %vm1099, %v1092, %v1096
        %v1101 = vand.u32 2147483647, %v567
        %vm1102 = vcmp.eq.f32.partialorder %v1101, 8.507059e+37
        %v1103 = vand.u32 %v567, 2147483648
        %v1104 = vor.u32 1.1754944e-38, %v1103
        %v1105 = vsel %vm1102, %v1104, %v1100
        %v1106 = vmul.f32 %v1041, %v1105
        %v1107 = vrcp.pop %v569
        %v1108 = vmul.f32 %v569, %v1107
        %v1109 = vsub.f32 1.0, %v1108
        %v1110 = vmul.f32 %v1107, %v1109
        %v1111 = vadd.f32 %v1107, %v1110
        %vm1112 = vweird.f32 %v569
        %vm1113 = vweird.f32 %v1107
        %vm1114 = vmor %vm1112, %vm1113
        %v1115 = vsel %vm1114, %v1107, %v1111
        %v1116 = vand.u32 2147483647, %v569
        %vm1117 = vcmp.eq.f32.partialorder %v1116, 8.507059e+37
        %v1118 = vand.u32 %v569, 2147483648
        %v1119 = vor.u32 1.1754944e-38, %v1118
        %v1120 = vsel %vm1117, %v1119, %v1115
        %v1121 = vmul.f32 %v1043, %v1120
        %v1122 = vrcp.pop %v571
        %v1123 = vmul.f32 %v571, %v1122
        %v1124 = vsub.f32 1.0, %v1123
        %v1125 = vmul.f32 %v1122, %v1124
        %v1126 = vadd.f32 %v1122, %v1125
        %vm1127 = vweird.f32 %v571
        %vm1128 = vweird.f32 %v1122
        %vm1129 = vmor %vm1127, %vm1128
        %v1130 = vsel %vm1129, %v1122, %v1126
        %v1131 = vand.u32 2147483647, %v571
        %vm1132 = vcmp.eq.f32.partialorder %v1131, 8.507059e+37
        %v1133 = vand.u32 %v571, 2147483648
        %v1134 = vor.u32 1.1754944e-38, %v1133
        %v1135 = vsel %vm1132, %v1134, %v1130
        %v1136 = vmul.f32 %v1045, %v1135
        %v1137 = vrcp.pop %v573
        %v1138 = vmul.f32 %v573, %v1137
        %v1139 = vsub.f32 1.0, %v1138
        %v1140 = vmul.f32 %v1137, %v1139
        %v1141 = vadd.f32 %v1137, %v1140
        %vm1142 = vweird.f32 %v573
        %vm1143 = vweird.f32 %v1137
        %vm1144 = vmor %vm1142, %vm1143
        %v1145 = vsel %vm1144, %v1137, %v1141
        %v1146 = vand.u32 2147483647, %v573
        %vm1147 = vcmp.eq.f32.partialorder %v1146, 8.507059e+37
        %v1148 = vand.u32 %v573, 2147483648
        %v1149 = vor.u32 1.1754944e-38, %v1148
        %v1150 = vsel %vm1147, %v1149, %v1145
        %v1151 = vmul.f32 %v1047, %v1150
        %v1152 = vrcp.pop %v575
        %v1153 = vmul.f32 %v575, %v1152
        %v1154 = vsub.f32 1.0, %v1153
        %v1155 = vmul.f32 %v1152, %v1154
        %v1156 = vadd.f32 %v1152, %v1155
        %vm1157 = vweird.f32 %v575
        %vm1158 = vweird.f32 %v1152
        %vm1159 = vmor %vm1157, %vm1158
        %v1160 = vsel %vm1159, %v1152, %v1156
        %v1161 = vand.u32 2147483647, %v575
        %vm1162 = vcmp.eq.f32.partialorder %v1161, 8.507059e+37
        %v1163 = vand.u32 %v575, 2147483648
        %v1164 = vor.u32 1.1754944e-38, %v1163
        %v1165 = vsel %vm1162, %v1164, %v1160
        %v1166 = vmul.f32 %v1049, %v1165
        %v1167 = vrcp.pop %v577
        %v1168 = vmul.f32 %v577, %v1167
        %v1169 = vsub.f32 1.0, %v1168
        %v1170 = vmul.f32 %v1167, %v1169
        %v1171 = vadd.f32 %v1167, %v1170
        %vm1172 = vweird.f32 %v577
        %vm1173 = vweird.f32 %v1167
        %vm1174 = vmor %vm1172, %vm1173
        %v1175 = vsel %vm1174, %v1167, %v1171
        %v1176 = vand.u32 2147483647, %v577
        %vm1177 = vcmp.eq.f32.partialorder %v1176, 8.507059e+37
        %v1178 = vand.u32 %v577, 2147483648
        %v1179 = vor.u32 1.1754944e-38, %v1178
        %v1180 = vsel %vm1177, %v1179, %v1175
        %v1181 = vmul.f32 %v1051, %v1180
        %v1182 = vrcp.pop %v579
        %v1183 = vmul.f32 %v579, %v1182
        %v1184 = vsub.f32 1.0, %v1183
        %v1185 = vmul.f32 %v1182, %v1184
        %v1186 = vadd.f32 %v1182, %v1185
        %vm1187 = vweird.f32 %v579
        %vm1188 = vweird.f32 %v1182
        %vm1189 = vmor %vm1187, %vm1188
        %v1190 = vsel %vm1189, %v1182, %v1186
        %v1191 = vand.u32 2147483647, %v579
        %vm1192 = vcmp.eq.f32.partialorder %v1191, 8.507059e+37
        %v1193 = vand.u32 %v579, 2147483648
        %v1194 = vor.u32 1.1754944e-38, %v1193
        %v1195 = vsel %vm1192, %v1194, %v1190
        %v1196 = vmul.f32 %v1053, %v1195
        %v1197 = vrcp.pop %v581
        %v1198 = vmul.f32 %v581, %v1197
        %v1199 = vsub.f32 1.0, %v1198
        %v1200 = vmul.f32 %v1197, %v1199
        %v1201 = vadd.f32 %v1197, %v1200
        %vm1202 = vweird.f32 %v581
        %vm1203 = vweird.f32 %v1197
        %vm1204 = vmor %vm1202, %vm1203
        %v1205 = vsel %vm1204, %v1197, %v1201
        %v1206 = vand.u32 2147483647, %v581
        %vm1207 = vcmp.eq.f32.partialorder %v1206, 8.507059e+37
        %v1208 = vand.u32 %v581, 2147483648
        %v1209 = vor.u32 1.1754944e-38, %v1208
        %v1210 = vsel %vm1207, %v1209, %v1205
        %v1211 = vmul.f32 %v1055, %v1210
        %v1212 = vrcp.pop %v583
        %v1213 = vmul.f32 %v583, %v1212
        %v1214 = vsub.f32 1.0, %v1213
        %v1215 = vmul.f32 %v1212, %v1214
        %v1216 = vadd.f32 %v1212, %v1215
        %vm1217 = vweird.f32 %v583
        %vm1218 = vweird.f32 %v1212
        %vm1219 = vmor %vm1217, %vm1218
        %v1220 = vsel %vm1219, %v1212, %v1216
        %v1221 = vand.u32 2147483647, %v583
        %vm1222 = vcmp.eq.f32.partialorder %v1221, 8.507059e+37
        %v1223 = vand.u32 %v583, 2147483648
        %v1224 = vor.u32 1.1754944e-38, %v1223
        %v1225 = vsel %vm1222, %v1224, %v1220
        %v1226 = vmul.f32 %v1057, %v1225
        %v1227 = vrcp.pop %v585
        %v1228 = vmul.f32 %v585, %v1227
        %v1229 = vsub.f32 1.0, %v1228
        %v1230 = vmul.f32 %v1227, %v1229
        %v1231 = vadd.f32 %v1227, %v1230
        %vm1232 = vweird.f32 %v585
        %vm1233 = vweird.f32 %v1227
        %vm1234 = vmor %vm1232, %vm1233
        %v1235 = vsel %vm1234, %v1227, %v1231
        %v1236 = vand.u32 2147483647, %v585
        %vm1237 = vcmp.eq.f32.partialorder %v1236, 8.507059e+37
        %v1238 = vand.u32 %v585, 2147483648
        %v1239 = vor.u32 1.1754944e-38, %v1238
        %v1240 = vsel %vm1237, %v1239, %v1235
        %v1241 = vmul.f32 %v1059, %v1240
        %v1242 = vrcp.pop %v587
        %v1243 = vmul.f32 %v587, %v1242
        %v1244 = vsub.f32 1.0, %v1243
        %v1245 = vmul.f32 %v1242, %v1244
        %v1246 = vadd.f32 %v1242, %v1245
        %vm1247 = vweird.f32 %v587
        %vm1248 = vweird.f32 %v1242
        %vm1249 = vmor %vm1247, %vm1248
        %v1250 = vsel %vm1249, %v1242, %v1246
        %v1251 = vand.u32 2147483647, %v587
        %vm1252 = vcmp.eq.f32.partialorder %v1251, 8.507059e+37
        %v1253 = vand.u32 %v587, 2147483648
        %v1254 = vor.u32 1.1754944e-38, %v1253
        %v1255 = vsel %vm1252, %v1254, %v1250
        %v1256 = vmul.f32 %v1061, %v1255
        %v1257 = vmul.f32 %v892, %v446
        %v1258 = vmul.f32 %v893, %v448
        %v1259 = vmul.f32 %v894, %v450
        %v1260 = vmul.f32 %v895, %v452
        %v1261 = vmul.f32 %v896, %v454
        %v1262 = vmul.f32 %v897, %v456
        %v1263 = vmul.f32 %v898, %v458
        %v1264 = vmul.f32 %v899, %v460
        %v1265 = vmul.f32 %v900, %v462
        %v1266 = vmul.f32 %v901, %v464
        %v1267 = vmul.f32 %v902, %v466
        %v1268 = vmul.f32 %v903, %v468
        %v1269 = vmul.f32 %v904, %v470
        %v1270 = vsub.f32 %v589, %v1257
        %v1271 = vsub.f32 %v591, %v1258
        %v1272 = vsub.f32 %v593, %v1259
        %v1273 = vsub.f32 %v595, %v1260
        %v1274 = vsub.f32 %v597, %v1261
        %v1275 = vsub.f32 %v599, %v1262
        %v1276 = vsub.f32 %v601, %v1263
        %v1277 = vsub.f32 %v603, %v1264
        %v1278 = vsub.f32 %v605, %v1265
        %v1279 = vsub.f32 %v607, %v1266
        %v1280 = vsub.f32 %v609, %v1267
        %v1281 = vsub.f32 %v611, %v1268
        %v1282 = vsub.f32 %v613, %v1269
        %v1283 = vsub.f32 %v1076, %v1270
        %v1284 = vsub.f32 %v1091, %v1271
        %v1285 = vsub.f32 %v1106, %v1272
        %v1286 = vsub.f32 %v1121, %v1273
        %v1287 = vsub.f32 %v1136, %v1274
        %v1288 = vsub.f32 %v1151, %v1275
        %v1289 = vsub.f32 %v1166, %v1276
        %v1290 = vsub.f32 %v1181, %v1277
        %v1291 = vsub.f32 %v1196, %v1278
        %v1292 = vsub.f32 %v1211, %v1279
        %v1293 = vsub.f32 %v1226, %v1280
        %v1294 = vsub.f32 %v1241, %v1281
        %v1295 = vsub.f32 %v1256, %v1282
        %v1296 = vadd.f32 %v1283, %v919
        %v1297 = vadd.f32 %v1284, %v920
        %v1298 = vadd.f32 %v1285, %v921
        %v1299 = vadd.f32 %v1286, %v922
        %v1300 = vadd.f32 %v1287, %v923
        %v1301 = vadd.f32 %v1288, %v924
        %v1302 = vadd.f32 %v1289, %v925
        %v1303 = vadd.f32 %v1290, %v926
        %v1304 = vadd.f32 %v1291, %v927
        %v1305 = vadd.f32 %v1292, %v928
        %v1306 = vadd.f32 %v1293, %v929
        %v1307 = vadd.f32 %v1294, %v930
        %v1308 = vadd.f32 %v1295, %v931
        %v1309 = vmul.f32 %v892, %v1296
        %v1310 = vmul.f32 %v893, %v1297
        %v1311 = vmul.f32 %v894, %v1298
        %v1312 = vmul.f32 %v895, %v1299
        %v1313 = vmul.f32 %v896, %v1300
        %v1314 = vmul.f32 %v897, %v1301
        %v1315 = vmul.f32 %v898, %v1302
        %v1316 = vmul.f32 %v899, %v1303
        %v1317 = vmul.f32 %v900, %v1304
        %v1318 = vmul.f32 %v901, %v1305
        %v1319 = vmul.f32 %v902, %v1306
        %v1320 = vmul.f32 %v903, %v1307
        %v1321 = vmul.f32 %v904, %v1308
        %s1322 = smul.u32 %s22, 104
        %v1323 = vlaneseq
        %v1324 = vshrl.u32 %v1323, 7
        %v1325 = vadd.s32 %v1324, 8
        %v1326 = vadd.s32 %v1324, 16
        %v1327 = vadd.s32 %v1324, 24
        %v1328 = vadd.s32 %v1324, 32
        %v1329 = vadd.s32 %v1324, 40
        %v1330 = vadd.s32 %v1324, 48
        %v1331 = vadd.s32 %v1324, 56
        %v1332 = vadd.s32 %v1324, 64
        %v1333 = vadd.s32 %v1324, 72
        %v1334 = vadd.s32 %v1324, 80
        %v1335 = vadd.s32 %v1324, 88
        %v1336 = vadd.s32 %v1324, 96
        %v1337 = vstv %s1322
        %v1338 = vadd.s32 %v1337, %v1324
        %v1339 = vadd.s32 %v1337, %v1325
        %v1340 = vadd.s32 %v1337, %v1326
        %v1341 = vadd.s32 %v1337, %v1327
        %v1342 = vadd.s32 %v1337, %v1328
        %v1343 = vadd.s32 %v1337, %v1329
        %v1344 = vadd.s32 %v1337, %v1330
        %v1345 = vadd.s32 %v1337, %v1331
        %v1346 = vadd.s32 %v1337, %v1332
        %v1347 = vadd.s32 %v1337, %v1333
        %v1348 = vadd.s32 %v1337, %v1334
        %v1349 = vadd.s32 %v1337, %v1335
        %v1350 = vadd.s32 %v1337, %v1336
        %vm1351 = vcmp.lt.s32.totalorder %v1338, 200
        %vm1352 = vcmp.lt.s32.totalorder %v1339, 200
        %vm1353 = vcmp.lt.s32.totalorder %v1340, 200
        %vm1354 = vcmp.lt.s32.totalorder %v1341, 200
        %vm1355 = vcmp.lt.s32.totalorder %v1342, 200
        %vm1356 = vcmp.lt.s32.totalorder %v1343, 200
        %vm1357 = vcmp.lt.s32.totalorder %v1344, 200
        %vm1358 = vcmp.lt.s32.totalorder %v1345, 200
        %vm1359 = vcmp.lt.s32.totalorder %v1346, 200
        %vm1360 = vcmp.lt.s32.totalorder %v1347, 200
        %vm1361 = vcmp.lt.s32.totalorder %v1348, 200
        %vm1362 = vcmp.lt.s32.totalorder %v1349, 200
        %vm1363 = vcmp.lt.s32.totalorder %v1350, 200
        %v1364 = vsel %vm1351, %v1309, 0.0
        %v1365 = vsel %vm1352, %v1310, 0.0
        %v1366 = vsel %vm1353, %v1311, 0.0
        %v1367 = vsel %vm1354, %v1312, 0.0
        %v1368 = vsel %vm1355, %v1313, 0.0
        %v1369 = vsel %vm1356, %v1314, 0.0
        %v1370 = vsel %vm1357, %v1315, 0.0
        %v1371 = vsel %vm1358, %v1316, 0.0
        %v1372 = vsel %vm1359, %v1317, 0.0
        %v1373 = vsel %vm1360, %v1318, 0.0
        %v1374 = vsel %vm1361, %v1319, 0.0
        %v1375 = vsel %vm1362, %v1320, 0.0
        %v1376 = vsel %vm1363, %v1321, 0.0
        %vm1377 = vcmask 7168
        %v1378 = vsel %vm1377, %v1364, 0.0
        %v1379 = vsel %vm1377, %v1365, 0.0
        %v1380 = vadd.f32 %v1378, %v1379
        %v1381 = vsel %vm1377, %v1366, 0.0
        %v1382 = vadd.f32 %v1380, %v1381
        %v1383 = vsel %vm1377, %v1367, 0.0
        %v1384 = vadd.f32 %v1382, %v1383
        %v1385 = vsel %vm1377, %v1368, 0.0
        %v1386 = vadd.f32 %v1384, %v1385
        %v1387 = vsel %vm1377, %v1369, 0.0
        %v1388 = vadd.f32 %v1386, %v1387
        %v1389 = vsel %vm1377, %v1370, 0.0
        %v1390 = vadd.f32 %v1388, %v1389
        %v1391 = vsel %vm1377, %v1371, 0.0
        %v1392 = vadd.f32 %v1390, %v1391
        %v1393 = vsel %vm1377, %v1372, 0.0
        %v1394 = vadd.f32 %v1392, %v1393
        %v1395 = vsel %vm1377, %v1373, 0.0
        %v1396 = vadd.f32 %v1394, %v1395
        %v1397 = vsel %vm1377, %v1374, 0.0
        %v1398 = vadd.f32 %v1396, %v1397
        %v1399 = vsel %vm1377, %v1375, 0.0
        %v1400 = vadd.f32 %v1398, %v1399
        %v1401 = vsel %vm1377, %v1376, 0.0
        %v1402 = vadd.f32 %v1400, %v1401
        %1403 = vadd.xlane.f32.xlu0 %v1402
        %v1404 = vpop.xlane.xlu0 %1403
        %v1405 = vrot.slane %v1404, 4
        %v1406 = vadd.f32 %v1404, %v1405
        %v1407 = vrot.slane %v1406, 2
        %v1408 = vadd.f32 %v1406, %v1407
        %v1409 = vrot.slane %v1408, 1
        %v1410 = vadd.f32 %v1408, %v1409
        %s1411 = vtos %v1410
        %v1412 = vstv %s1411
        %1413 = vst [vmem:[%s294] sm:$0xff] %v1412
        %s1414 = sand.u32 %s129, 1
        %s1415 = scalar_lea.sflag [#allocation4], %s1414
        %s1416 = sand.u32 %s129, 1
        %s1417 = smul.addr %s1416, 8
        %s1418 = scalar_lea.vmem [#allocation7], %s1417
        // Predicated region
        $region45: #{tpu_custom_call.1} parent=35 // pred_check
          %p1419 = pneg %p139
        $region46: #{tpu_custom_call.1} parent=35 // pred_check_branch
          %1421 = sbr.rel (%p1419) target = $region48
        $region47: #{tpu_custom_call.1} parent=35 // pred_region
          %1423 = vsyncadd %s1415, 0
          %s1424 = smul.addr %s22, 8
          %s1425 = scalar_lea.hbm %s4, %s1424
          %s1427 = sshll.u32 %s1418, 4
          %s1428 = int_to_ptr.vmem [resolvable:$true] %s1427
          %s1429 = sshll.u32 %s1425, 4
          %s1430 = int_to_ptr.hbm [resolvable:$true] %s1429
          %1432 = dma.vmem_to_hbm [thread:$0]  %s1428, 128, %s1430, %s1415
        $region48: #{tpu_custom_call.1} parent=35 // pred_fallthru
          _
      $region36: #{tpu_custom_call.1} parent=5 // pred_fallthru
        _
      %p1433 = scmp.le.s32.totalorder 2, %s17
      // Predicated region
      $region49: #{tpu_custom_call.1} parent=5 // pred_check
        %p1434 = pneg %p1433
      $region50: #{tpu_custom_call.1} parent=5 // pred_check_branch
        %1436 = sbr.rel (%p1434) target = $region52
      $region51: #{tpu_custom_call.1} parent=5 // pred_region
        %s1437 = ssub.s32 %s17, 2
        // Predicated region
        $region53: #{tpu_custom_call.1} parent=51 // pred_check
          %p1438 = pneg %p145
        $region54: #{tpu_custom_call.1} parent=51 // pred_check_branch
          %1440 = sbr.rel (%p1438) target = $region56
        $region55: #{tpu_custom_call.1} parent=51 // pred_region
          %s1441 = sand.u32 %s130, 1
          %s1442 = scalar_lea.sflag [#allocation4], %s1441
          %s1443 = sand.u32 %s130, 1
          %s1444 = smul.addr %s1443, 8
          %s1445 = scalar_lea.vmem [#allocation7], %s1444
          %1447 = dma.done %s1442, 128
        $region56: #{tpu_custom_call.1} parent=51 // pred_fallthru
          _
      $region52: #{tpu_custom_call.1} parent=5 // pred_fallthru
        _
    $region6: #{tpu_custom_call.1} parent=1 // loop_footer
      %s21 = sadd.s32 1, %s17
    $region7: #{tpu_custom_call.1} parent=1 // loop_footer_branch
      %16 = sbr.rel target = $region3
    $region8: #{tpu_custom_call.1} parent=1 // loop_exit
      _
    %1448 = vsyncpa [#allocation3], 1
    %s1449 = scalar_lea.sflag [#allocation3], 1
    %1450 = vsyncpa %s1449, 1
    %1451 = vsyncpa [#allocation4], 1
    %s1452 = scalar_lea.sflag [#allocation4], 1
    %1453 = vsyncpa %s1452, 1
    %1454 = vsyncpa [#allocation5], 1
    %s1455 = scalar_lea.sflag [#allocation5], 1
    %1456 = vsyncpa %s1455, 1

</llo_original>
